<compile_context>
chip_gen: v7x
topology: tpu7x:2x2x1
jax: 0.10.0
libtpu: 0.0.40
codegen_flags: <defaults>
</compile_context>

<pallas_src>
import jax
import jax.numpy as jnp
from jax.experimental import pallas as pl
from jax.experimental.pallas import tpu as pltpu


# ----------------------------------------------------------------------------
# Fused Pallas kernel: conv3x3(same) + bias + ReLU + 2x2/2 max-pool + DropBlock
# ----------------------------------------------------------------------------
def _conv_relu_pool_drop_kernel(p_ref, w_ref, b_ref, m_ref, o_ref):
    """One cols-block per grid step, channel-major layout.

    p_ref: (K, 4*cb)   im2col patches, the 4 pool-corner slabs concatenated
                       along lanes; K = 9*Cin, cb = cols block (lane dim)
    w_ref: (Cout, K)   conv weight, pre-scaled by the DropBlock normalize scale
    b_ref: (Cout, 1)   conv bias, pre-scaled likewise
    m_ref: (Cout, cb)  binary {0,1} DropBlock mask (bf16)
    o_ref: (Cout, cb)  pooled, masked output (lane-dense store)
    """
    cb = o_ref.shape[-1]
    # One wide MXU matmul covers all 4 pool corners at once.
    z = jnp.dot(w_ref[...], p_ref[...], preferred_element_type=jnp.float32)
    # 2x2/stride-2 max-pool == elementwise max of the 4 corner slabs (VPU).
    pooled = jnp.maximum(jnp.maximum(z[:, 0 * cb:1 * cb], z[:, 1 * cb:2 * cb]),
                         jnp.maximum(z[:, 2 * cb:3 * cb], z[:, 3 * cb:4 * cb]))
    pooled = jnp.maximum(pooled + b_ref[...], 0.0)          # bias + ReLU (once)
    o_ref[...] = (pooled * m_ref[...].astype(jnp.float32)).astype(o_ref.dtype)


# ----------------------------------------------------------------------------
# Grid selection (generation / batch aware)
# ----------------------------------------------------------------------------
def _num_tensorcores():
    """Best-effort TensorCore count of the local chip (v7x: 2, v5e/v6e: 1)."""
    try:
        info = pltpu.get_tpu_info()
        for attr in ("num_cores", "tensorcore_count", "num_tensorcores",
                     "core_count", "cores_per_chip"):
            v = getattr(info, attr, None)
            if isinstance(v, int) and not isinstance(v, bool) and v > 0:
                return max(1, min(int(v), 8))
    except Exception:
        pass
    try:
        if "v7" in jax.devices()[0].device_kind.lower():
            return 2
    except Exception:
        pass
    return 1


def _choose_grid(cols, n_cores):
    """Pick (n_steps, cols_blk) for the lane (cols) grid axis.

    Prefer ~2048-lane blocks when the problem gives >=4 steps (lets BlockSpec
    double-buffering hide the patch DMA); otherwise split across TensorCores
    only when each core still gets >= 512 lanes; otherwise one full-width step
    (single-TC v5e/v6e and the tiny stage-2 call).
    """
    if cols % 128 != 0:
        # TODO(synk): non-multiple-of-128 cols (odd batch) falls back to one
        # masked-store step -- correct but a perf cliff.
        return 1, cols
    units = cols // 128
    if units >= 64:                        # >= 8192 cols: ~2048-lane tiles
        for blk in range(16, 0, -1):       # largest divisor of `units` <= 16
            if units % blk == 0:
                return units // blk, blk * 128
    if n_cores > 1 and units % n_cores == 0 and (units // n_cores) >= 4:
        return n_cores, (units // n_cores) * 128
    return 1, cols


# ----------------------------------------------------------------------------
# Wrapper-side helpers (plain XLA)
# ----------------------------------------------------------------------------
def _corner_patches_lanes(a_cm, n_steps, cols_blk):
    """Channel-major (Cin, N, H, W) -> (K, n_steps*4*cols_blk) bf16 patches.

    Per grid step s the 4 pool-corner im2col slabs are adjacent along lanes:
    lane = s*(4*cols_blk) + q*cols_blk + c, where c indexes the global output
    column col = s*cols_blk + c = n*Ho*Wo + i*Wo + j.
    """
    cin, n, h, w = a_cm.shape
    ho, wo = h // 2, w // 2
    k = 9 * cin
    cols = n * ho * wo
    a = a_cm.astype(jnp.bfloat16)                       # halve the glue traffic
    ap = jnp.pad(a, ((0, 0), (0, 0), (1, 1), (1, 1)))
    # tap-major, channel-minor K ordering (matches the weight reshape below).
    taps = jnp.stack([ap[:, :, dy:dy + h, dx:dx + w]
                      for dy in range(3) for dx in range(3)], axis=0)
    taps = taps.reshape(k, n, h, w)                     # (K, N, H, W)
    corners = jnp.stack([taps[:, :, qy::2, qx::2].reshape(k, cols)
                         for qy in range(2) for qx in range(2)], axis=1)  # (K,4,cols)
    if n_steps > 1:
        corners = (corners.reshape(k, 4, n_steps, cols_blk)
                   .transpose(0, 2, 1, 3))              # (K, n_steps, 4, cb)
    return corners.reshape(k, n_steps * 4 * cols_blk)


def dropblock2d_mask(key, n, c, h, w, *, p=0.2, block_size=5, eps=1e-6):
    """torchvision.ops.drop_block2d (training=True) binary keep-mask, returned
    channel-major bf16 as (C, N*H*W), plus the global normalize scale (f32).

    # TODO(synk): uses JAX RNG (same distribution, not torch's RNG stream) and
    # runs in plain XLA: the normalize scale is a global batch reduction and
    # the TPU PRNG primitives have no interpret-mode lowering.
    """
    bs = min(block_size, h, w)
    pad = bs // 2
    gamma = (p * h * w) / ((bs ** 2) * ((h - bs + 1) * (w - bs + 1)))
    noise = (jax.random.uniform(key, (n, c, h - bs + 1, w - bs + 1))
             < gamma).astype(jnp.float32)
    noise = jnp.pad(noise, ((0, 0), (0, 0), (pad, pad), (pad, pad)))
    block = jax.lax.reduce_window(
        noise, 0.0, jax.lax.max,
        window_dimensions=(1, 1, bs, bs), window_strides=(1, 1, 1, 1),
        padding=((0, 0), (0, 0), (pad, pad), (pad, pad)))
    mask = 1.0 - block                                   # (N, C, H, W) in {0,1}
    scale = mask.size / (eps + jnp.sum(mask))
    mask_cm = mask.astype(jnp.bfloat16).transpose(1, 0, 2, 3).reshape(c, n * h * w)
    return mask_cm, scale.astype(jnp.float32)


# ----------------------------------------------------------------------------
# One conv stage = one pallas_call
# ----------------------------------------------------------------------------
def conv_relu_pool_dropblock(a_cm, w_pt, b, mask_cm, scale):
    """a_cm: (Cin, N, H, W) channel-major f32; w_pt: (Cout, Cin, 3, 3) PyTorch
    layout; b: (Cout,); mask_cm: (Cout, N*(H//2)*(W//2)) binary bf16; scale:
    DropBlock normalize scale (folded into weight & bias here).
    Returns channel-major (Cout, N, H//2, W//2) f32."""
    cin, n, h, w = a_cm.shape
    cout = w_pt.shape[0]
    ho, wo = h // 2, w // 2
    k = 9 * cin
    cols = n * ho * wo
    n_steps, cols_blk = _choose_grid(cols, _num_tensorcores())

    patches = _corner_patches_lanes(a_cm, n_steps, cols_blk)  # (K, steps*4*cb) bf16
    w2 = (jnp.transpose(w_pt, (0, 2, 3, 1)).reshape(cout, k)
          * scale).astype(jnp.bfloat16)                       # (Cout, K), pre-scaled
    b2 = (b * scale).reshape(cout, 1).astype(jnp.float32)     # (Cout, 1), pre-scaled

    out = pl.pallas_call(
        _conv_relu_pool_drop_kernel,
        out_shape=jax.ShapeDtypeStruct((cout, cols), jnp.float32),
        grid=(n_steps,),
        in_specs=[
            pl.BlockSpec((k, 4 * cols_blk), lambda i: (0, i)),
            pl.BlockSpec((cout, k), lambda i: (0, 0)),
            pl.BlockSpec((cout, 1), lambda i: (0, 0)),
            pl.BlockSpec((cout, cols_blk), lambda i: (0, i)),
        ],
        out_specs=pl.BlockSpec((cout, cols_blk), lambda i: (0, i)),
        compiler_params=pltpu.CompilerParams(dimension_semantics=("parallel",)),
    )(patches, w2, b2, mask_cm)

    return out.reshape(cout, n, ho, wo)                       # stays channel-major


# ----------------------------------------------------------------------------
# Model wrapper
# ----------------------------------------------------------------------------
def make_params(key):
    """Deterministic init with the PyTorch module's parameter shapes."""
    ks = jax.random.split(key, 6)
    return dict(
        w1=jax.random.normal(ks[0], (16, 3, 3, 3), jnp.float32) * 0.10,
        b1=jax.random.normal(ks[1], (16,), jnp.float32) * 0.10,
        w2=jax.random.normal(ks[2], (32, 16, 3, 3), jnp.float32) * 0.05,
        b2=jax.random.normal(ks[3], (32,), jnp.float32) * 0.05,
        wfc=jax.random.normal(ks[4], (10, 32 * 8 * 8), jnp.float32) * 0.02,
        bfc=jax.random.normal(ks[5], (10,), jnp.float32) * 0.02,
    )


def prepare_params(params):
    """One-time prep: expose the fc weight as (out, C, H*W) so the forward can
    consume the channel-major activations without any activation transpose
    (PyTorch flatten order is c*64 + h*8 + w)."""
    out = dict(params)
    out["wfc3"] = params["wfc"].reshape(10, 32, 8 * 8)
    return out


def my_cnn_forward(x_nchw, params, drop_key):
    n = x_nchw.shape[0]
    x_cm = jnp.transpose(x_nchw, (1, 0, 2, 3)).astype(jnp.float32)  # (Cin,N,H,W)
    k1, k2 = jax.random.split(drop_key)
    m1, s1 = dropblock2d_mask(k1, n, 16, 16, 16)    # mask for (N,16,16,16)
    m2, s2 = dropblock2d_mask(k2, n, 32, 8, 8)      # mask for (N,32,8,8)

    h1 = conv_relu_pool_dropblock(x_cm, params["w1"], params["b1"], m1, s1)  # (16,N,16,16)
    h2 = conv_relu_pool_dropblock(h1, params["w2"], params["b2"], m2, s2)    # (32,N,8,8)

    feat = h2.reshape(32, n, 8 * 8)                 # (C, N, H*W), no transpose
    # TODO(synk): the (N,2048)x(2048,10) linear stays in plain XLA -- a Pallas
    # call for an (N,10) output is pure launch overhead at these sizes.
    return jnp.einsum("cns,ocs->no", feat, params["wfc3"]) + params["bfc"]


if __name__ == "__main__":
    key = jax.random.PRNGKey(0)
    kx, kp, kd = jax.random.split(key, 3)
    x = jax.random.normal(kx, (4, 3, 32, 32), jnp.float32)   # small batch, NCHW
    params = prepare_params(make_params(kp))

    fwd = jax.jit(my_cnn_forward)
    out = jax.block_until_ready(fwd(x, params, kd))

    assert out.shape == (4, 10), out.shape
    assert bool(jnp.all(jnp.isfinite(out)))
    print("KERNEL_OK")
</pallas_src>

<mosaic_0001>
module attributes {stable_mosaic.version = 11 : i64} {
  func.func @_conv_relu_pool_drop_kernel(%arg0: i32, %arg1: memref<27x4096xbf16, #tpu.memory_space<vmem>>, %arg2: memref<16x27xbf16, #tpu.memory_space<vmem>>, %arg3: memref<16x1xf32, #tpu.memory_space<vmem>>, %arg4: memref<16x1024xbf16, #tpu.memory_space<vmem>>, %arg5: memref<16x1024xf32, #tpu.memory_space<vmem>>) attributes {dimension_semantics = [#tpu.dimension_semantics<parallel>], iteration_bounds = array<i64: 1>, scalar_prefetch = 0 : i64, scratch_operands = 0 : i64, tpu.core_type = #tpu.core_type<tc>, window_params = [{transform_indices = @transform_0, window_bounds = array<i64: 27, 4096>}, {pipeline_mode = #tpu.pipeline_mode<synchronous>, transform_indices = @transform_1, window_bounds = array<i64: 16, 27>}, {pipeline_mode = #tpu.pipeline_mode<synchronous>, transform_indices = @transform_2, window_bounds = array<i64: 16, 1>}, {transform_indices = @transform_3, window_bounds = array<i64: 16, 1024>}, {transform_indices = @transform_4, window_bounds = array<i64: 16, 1024>}]} {
    %c0 = arith.constant 0 : index
    %c0_0 = arith.constant 0 : index
    %0 = vector.load %arg2[%c0, %c0_0] : memref<16x27xbf16, #tpu.memory_space<vmem>>, vector<16x27xbf16>
    %c0_1 = arith.constant 0 : index
    %c0_2 = arith.constant 0 : index
    %1 = vector.load %arg1[%c0_1, %c0_2] : memref<27x4096xbf16, #tpu.memory_space<vmem>>, vector<27x4096xbf16>
    %cst = arith.constant dense<0.000000e+00> : vector<16x4096xf32>
    %2 = tpu.matmul %0, %1, %cst {dimension_numbers = #tpu.dot_dimension_numbers<[1], [0], [0], [1], [0, 0, 1, 1], [], []>} : vector<16x27xbf16>, vector<27x4096xbf16>, vector<16x4096xf32> -> vector<16x4096xf32>
    %3 = vector.extract_strided_slice %2 {offsets = [0, 0], sizes = [16, 1024], strides = [1, 1]} : vector<16x4096xf32> to vector<16x1024xf32>
    %4 = vector.extract_strided_slice %2 {offsets = [0, 1024], sizes = [16, 1024], strides = [1, 1]} : vector<16x4096xf32> to vector<16x1024xf32>
    %5 = arith.maximumf %3, %4 : vector<16x1024xf32>
    %6 = vector.extract_strided_slice %2 {offsets = [0, 2048], sizes = [16, 1024], strides = [1, 1]} : vector<16x4096xf32> to vector<16x1024xf32>
    %7 = vector.extract_strided_slice %2 {offsets = [0, 3072], sizes = [16, 1024], strides = [1, 1]} : vector<16x4096xf32> to vector<16x1024xf32>
    %8 = arith.maximumf %6, %7 : vector<16x1024xf32>
    %9 = arith.maximumf %5, %8 : vector<16x1024xf32>
    %c0_3 = arith.constant 0 : index
    %c0_4 = arith.constant 0 : index
    %10 = vector.load %arg3[%c0_3, %c0_4] : memref<16x1xf32, #tpu.memory_space<vmem>>, vector<16x1xf32>
    %11 = vector.broadcast %10 : vector<16x1xf32> to vector<16x1024xf32>
    %12 = arith.addf %9, %11 : vector<16x1024xf32>
    %cst_5 = arith.constant 0.000000e+00 : f32
    %13 = vector.broadcast %cst_5 : f32 to vector<16x1024xf32>
    %14 = arith.maximumf %12, %13 : vector<16x1024xf32>
    %c0_6 = arith.constant 0 : index
    %c0_7 = arith.constant 0 : index
    %15 = vector.load %arg4[%c0_6, %c0_7] : memref<16x1024xbf16, #tpu.memory_space<vmem>>, vector<16x1024xbf16>
    %16 = arith.extf %15 : vector<16x1024xbf16> to vector<16x1024xf32>
    %17 = arith.mulf %14, %16 : vector<16x1024xf32>
    %c0_8 = arith.constant 0 : index
    %c0_9 = arith.constant 0 : index
    %18 = vector.load %arg5[%c0_8, %c0_9] : memref<16x1024xf32, #tpu.memory_space<vmem>>, vector<16x1024xf32>
    tpu.vector_store %arg5[%c0_8, %c0_9], %17 {strides = array<i32>} : memref<16x1024xf32, #tpu.memory_space<vmem>>, vector<16x1024xf32>,
    return
  }
  func.func @transform_0(%arg0: i32) -> (i32, i32) {
    %c0_i32 = arith.constant 0 : i32
    %c0_i32_0 = arith.constant 0 : i32
    return %c0_i32, %arg0 : i32, i32
  }
  func.func @transform_1(%arg0: i32) -> (i32, i32) {
    %c0_i32 = arith.constant 0 : i32
    %c0_i32_0 = arith.constant 0 : i32
    %c0_i32_1 = arith.constant 0 : i32
    return %c0_i32, %c0_i32_0 : i32, i32
  }
  func.func @transform_2(%arg0: i32) -> (i32, i32) {
    %c0_i32 = arith.constant 0 : i32
    %c0_i32_0 = arith.constant 0 : i32
    %c0_i32_1 = arith.constant 0 : i32
    return %c0_i32, %c0_i32_0 : i32, i32
  }
  func.func @transform_3(%arg0: i32) -> (i32, i32) {
    %c0_i32 = arith.constant 0 : i32
    %c0_i32_0 = arith.constant 0 : i32
    return %c0_i32, %arg0 : i32, i32
  }
  func.func @transform_4(%arg0: i32) -> (i32, i32) {
    %c0_i32 = arith.constant 0 : i32
    %c0_i32_0 = arith.constant 0 : i32
    return %c0_i32, %arg0 : i32, i32
  }
}

module attributes {stable_mosaic.version = 11 : i64} {
  func.func @_conv_relu_pool_drop_kernel(%arg0: i32, %arg1: memref<144x1024xbf16, #tpu.memory_space<vmem>>, %arg2: memref<32x144xbf16, #tpu.memory_space<vmem>>, %arg3: memref<32x1xf32, #tpu.memory_space<vmem>>, %arg4: memref<32x256xbf16, #tpu.memory_space<vmem>>, %arg5: memref<32x256xf32, #tpu.memory_space<vmem>>) attributes {dimension_semantics = [#tpu.dimension_semantics<parallel>], iteration_bounds = array<i64: 1>, scalar_prefetch = 0 : i64, scratch_operands = 0 : i64, tpu.core_type = #tpu.core_type<tc>, window_params = [{transform_indices = @transform_0, window_bounds = array<i64: 144, 1024>}, {pipeline_mode = #tpu.pipeline_mode<synchronous>, transform_indices = @transform_1, window_bounds = array<i64: 32, 144>}, {pipeline_mode = #tpu.pipeline_mode<synchronous>, transform_indices = @transform_2, window_bounds = array<i64: 32, 1>}, {transform_indices = @transform_3, window_bounds = array<i64: 32, 256>}, {transform_indices = @transform_4, window_bounds = array<i64: 32, 256>}]} {
    %c0 = arith.constant 0 : index
    %c0_0 = arith.constant 0 : index
    %0 = vector.load %arg2[%c0, %c0_0] : memref<32x144xbf16, #tpu.memory_space<vmem>>, vector<32x144xbf16>
    %c0_1 = arith.constant 0 : index
    %c0_2 = arith.constant 0 : index
    %1 = vector.load %arg1[%c0_1, %c0_2] : memref<144x1024xbf16, #tpu.memory_space<vmem>>, vector<144x1024xbf16>
    %cst = arith.constant dense<0.000000e+00> : vector<32x1024xf32>
    %2 = tpu.matmul %0, %1, %cst {dimension_numbers = #tpu.dot_dimension_numbers<[1], [0], [0], [1], [0, 0, 1, 1], [], []>} : vector<32x144xbf16>, vector<144x1024xbf16>, vector<32x1024xf32> -> vector<32x1024xf32>
    %3 = vector.extract_strided_slice %2 {offsets = [0, 0], sizes = [32, 256], strides = [1, 1]} : vector<32x1024xf32> to vector<32x256xf32>
    %4 = vector.extract_strided_slice %2 {offsets = [0, 256], sizes = [32, 256], strides = [1, 1]} : vector<32x1024xf32> to vector<32x256xf32>
    %5 = arith.maximumf %3, %4 : vector<32x256xf32>
    %6 = vector.extract_strided_slice %2 {offsets = [0, 512], sizes = [32, 256], strides = [1, 1]} : vector<32x1024xf32> to vector<32x256xf32>
    %7 = vector.extract_strided_slice %2 {offsets = [0, 768], sizes = [32, 256], strides = [1, 1]} : vector<32x1024xf32> to vector<32x256xf32>
    %8 = arith.maximumf %6, %7 : vector<32x256xf32>
    %9 = arith.maximumf %5, %8 : vector<32x256xf32>
    %c0_3 = arith.constant 0 : index
    %c0_4 = arith.constant 0 : index
    %10 = vector.load %arg3[%c0_3, %c0_4] : memref<32x1xf32, #tpu.memory_space<vmem>>, vector<32x1xf32>
    %11 = vector.broadcast %10 : vector<32x1xf32> to vector<32x256xf32>
    %12 = arith.addf %9, %11 : vector<32x256xf32>
    %cst_5 = arith.constant 0.000000e+00 : f32
    %13 = vector.broadcast %cst_5 : f32 to vector<32x256xf32>
    %14 = arith.maximumf %12, %13 : vector<32x256xf32>
    %c0_6 = arith.constant 0 : index
    %c0_7 = arith.constant 0 : index
    %15 = vector.load %arg4[%c0_6, %c0_7] : memref<32x256xbf16, #tpu.memory_space<vmem>>, vector<32x256xbf16>
    %16 = arith.extf %15 : vector<32x256xbf16> to vector<32x256xf32>
    %17 = arith.mulf %14, %16 : vector<32x256xf32>
    %c0_8 = arith.constant 0 : index
    %c0_9 = arith.constant 0 : index
    %18 = vector.load %arg5[%c0_8, %c0_9] : memref<32x256xf32, #tpu.memory_space<vmem>>, vector<32x256xf32>
    tpu.vector_store %arg5[%c0_8, %c0_9], %17 {strides = array<i32>} : memref<32x256xf32, #tpu.memory_space<vmem>>, vector<32x256xf32>,
    return
  }
  func.func @transform_0(%arg0: i32) -> (i32, i32) {
    %c0_i32 = arith.constant 0 : i32
    %c0_i32_0 = arith.constant 0 : i32
    return %c0_i32, %arg0 : i32, i32
  }
  func.func @transform_1(%arg0: i32) -> (i32, i32) {
    %c0_i32 = arith.constant 0 : i32
    %c0_i32_0 = arith.constant 0 : i32
    %c0_i32_1 = arith.constant 0 : i32
    return %c0_i32, %c0_i32_0 : i32, i32
  }
  func.func @transform_2(%arg0: i32) -> (i32, i32) {
    %c0_i32 = arith.constant 0 : i32
    %c0_i32_0 = arith.constant 0 : i32
    %c0_i32_1 = arith.constant 0 : i32
    return %c0_i32, %c0_i32_0 : i32, i32
  }
  func.func @transform_3(%arg0: i32) -> (i32, i32) {
    %c0_i32 = arith.constant 0 : i32
    %c0_i32_0 = arith.constant 0 : i32
    return %c0_i32, %arg0 : i32, i32
  }
  func.func @transform_4(%arg0: i32) -> (i32, i32) {
    %c0_i32 = arith.constant 0 : i32
    %c0_i32_0 = arith.constant 0 : i32
    return %c0_i32, %arg0 : i32, i32
  }
}

</mosaic_0001>

<llo_original>
// kernel: my_cnn_forward.4
$region0: #{my_cnn_forward.4}
  #allocation0 [shape = 'u32[]', space=smem, size = 0x4, offset = 0x4, fixed_abs, tag = 'smem constant byte address 0x4 - core index']
  #allocation1 [shape = 'u32[144,128]{1,0:T(1,128)}', space=vmem, size = 0x12000, scoped, tag = 'internal scratch']
  %s0 = inlined_call_operand.vmem [shape: bf16[27,4096], index: 0, kind: input, shape index: {}]
  %s1 = inlined_call_operand.vmem [shape: bf16[16,27], index: 1, kind: input, shape index: {}]
  %s2 = inlined_call_operand.vmem [shape: f32[16,1], index: 2, kind: input, shape index: {}]
  %s3 = inlined_call_operand.vmem [shape: bf16[16,1024], index: 3, kind: input, shape index: {}]
  %s4 = inlined_call_operand.vmem [shape: f32[16,1024], index: 4, kind: output, shape index: {}]
  %s5 = sld [smem:[#allocation0]]
  $region26: #{my_cnn_forward.4} parent=0
    _
  %s7 = ssub.s32 1, %s5
  %s8 = scalar_select 0, %s7, %s5
  // Predicated region
  $region2: #{my_cnn_forward.4} parent=0 // pred_check
    _
  $region3: #{my_cnn_forward.4} parent=0 // pred_check_branch
    %10 = sbr.rel (0) target = $region5
  $region4: #{my_cnn_forward.4} parent=0 // pred_region
    _
  $region5: #{my_cnn_forward.4} parent=0 // pred_fallthru
    _
  // Predicated region
  $region6: #{my_cnn_forward.4} parent=0 // pred_check
    _
  $region7: #{my_cnn_forward.4} parent=0 // pred_check_branch
    %12 = sbr.rel (0) target = $region9
  $region8: #{my_cnn_forward.4} parent=0 // pred_region
    _
  $region9: #{my_cnn_forward.4} parent=0 // pred_fallthru
    _
  // Predicated region
  $region10: #{my_cnn_forward.4} parent=0 // pred_check
    _
  $region11: #{my_cnn_forward.4} parent=0 // pred_check_branch
    %14 = sbr.rel (0) target = $region13
  $region12: #{my_cnn_forward.4} parent=0 // pred_region
    _
  $region13: #{my_cnn_forward.4} parent=0 // pred_fallthru
    _
  // Predicated region
  $region14: #{my_cnn_forward.4} parent=0 // pred_check
    _
  $region15: #{my_cnn_forward.4} parent=0 // pred_check_branch
    %16 = sbr.rel (0) target = $region17
  $region16: #{my_cnn_forward.4} parent=0 // pred_region
    _
  $region17: #{my_cnn_forward.4} parent=0 // pred_fallthru
    _
  %v18 = vld [vmem:[%s1] sm:$0xf]
  %v19 = vld [vmem:[%s1 + $0x4] sm:$0xf]
  %v20 = vld [vmem:[%s0] sm:$0xff]
  %v21 = vld [vmem:[%s0 + $0x8] sm:$0xff]
  %v22 = vld [vmem:[%s0 + $0x10] sm:$0xff]
  %v23 = vld [vmem:[%s0 + $0x18] sm:$0xff]
  %v24 = vld [vmem:[%s0 + $0x20] sm:$0xff]
  %v25 = vld [vmem:[%s0 + $0x28] sm:$0xff]
  %v26 = vld [vmem:[%s0 + $0x30] sm:$0xff]
  %v27 = vld [vmem:[%s0 + $0x38] sm:$0xff]
  %v28 = vld [vmem:[%s0 + $0x40] sm:$0xff]
  %v29 = vld [vmem:[%s0 + $0x48] sm:$0xff]
  %v30 = vld [vmem:[%s0 + $0x50] sm:$0xff]
  %v31 = vld [vmem:[%s0 + $0x58] sm:$0xff]
  %v32 = vld [vmem:[%s0 + $0x60] sm:$0xff]
  %v33 = vld [vmem:[%s0 + $0x68] sm:$0xff]
  %v34 = vld [vmem:[%s0 + $0x70] sm:$0xff]
  %v35 = vld [vmem:[%s0 + $0x78] sm:$0xff]
  %v36 = vld [vmem:[%s0 + $0x80] sm:$0xff]
  %v37 = vld [vmem:[%s0 + $0x88] sm:$0xff]
  %v38 = vld [vmem:[%s0 + $0x90] sm:$0xff]
  %v39 = vld [vmem:[%s0 + $0x98] sm:$0xff]
  %v40 = vld [vmem:[%s0 + $0xa0] sm:$0xff]
  %v41 = vld [vmem:[%s0 + $0xa8] sm:$0xff]
  %v42 = vld [vmem:[%s0 + $0xb0] sm:$0xff]
  %v43 = vld [vmem:[%s0 + $0xb8] sm:$0xff]
  %v44 = vld [vmem:[%s0 + $0xc0] sm:$0xff]
  %v45 = vld [vmem:[%s0 + $0xc8] sm:$0xff]
  %v46 = vld [vmem:[%s0 + $0xd0] sm:$0xff]
  %v47 = vld [vmem:[%s0 + $0xd8] sm:$0xff]
  %v48 = vld [vmem:[%s0 + $0xe0] sm:$0xff]
  %v49 = vld [vmem:[%s0 + $0xe8] sm:$0xff]
  %v50 = vld [vmem:[%s0 + $0xf0] sm:$0xff]
  %v51 = vld [vmem:[%s0 + $0xf8] sm:$0xff]
  %v52 = vld [vmem:[%s0 + $0x100] sm:$0xff]
  %v53 = vld [vmem:[%s0 + $0x108] sm:$0xff]
  %v54 = vld [vmem:[%s0 + $0x110] sm:$0xff]
  %v55 = vld [vmem:[%s0 + $0x118] sm:$0xff]
  %v56 = vld [vmem:[%s0 + $0x120] sm:$0xff]
  %v57 = vld [vmem:[%s0 + $0x128] sm:$0xff]
  %v58 = vld [vmem:[%s0 + $0x130] sm:$0xff]
  %v59 = vld [vmem:[%s0 + $0x138] sm:$0xff]
  %v60 = vld [vmem:[%s0 + $0x140] sm:$0xff]
  %v61 = vld [vmem:[%s0 + $0x148] sm:$0xff]
  %v62 = vld [vmem:[%s0 + $0x150] sm:$0xff]
  %v63 = vld [vmem:[%s0 + $0x158] sm:$0xff]
  %v64 = vld [vmem:[%s0 + $0x160] sm:$0xff]
  %v65 = vld [vmem:[%s0 + $0x168] sm:$0xff]
  %v66 = vld [vmem:[%s0 + $0x170] sm:$0xff]
  %v67 = vld [vmem:[%s0 + $0x178] sm:$0xff]
  %v68 = vld [vmem:[%s0 + $0x180] sm:$0x33]
  %v69 = vld [vmem:[%s0 + $0x188] sm:$0x33]
  %v70 = vld [vmem:[%s0 + $0x190] sm:$0x33]
  %v71 = vld [vmem:[%s0 + $0x198] sm:$0x33]
  %v72 = vld [vmem:[%s0 + $0x1a0] sm:$0x33]
  %v73 = vld [vmem:[%s0 + $0x1a8] sm:$0x33]
  %v74 = vld [vmem:[%s0 + $0x1b0] sm:$0x33]
  %v75 = vld [vmem:[%s0 + $0x1b8] sm:$0x33]
  %v76 = vld [vmem:[%s0 + $0x1c0] sm:$0x33]
  %v77 = vld [vmem:[%s0 + $0x1c8] sm:$0x33]
  %v78 = vld [vmem:[%s0 + $0x1d0] sm:$0x33]
  %v79 = vld [vmem:[%s0 + $0x1d8] sm:$0x33]
  %v80 = vld [vmem:[%s0 + $0x1e0] sm:$0x33]
  %v81 = vld [vmem:[%s0 + $0x1e8] sm:$0x33]
  %v82 = vld [vmem:[%s0 + $0x1f0] sm:$0x33]
  %v83 = vld [vmem:[%s0 + $0x1f8] sm:$0x33]
  %v86 = vunpack.c.l.b16 %v18
  %v87 = vunpack.c.l.b16 %v19
  %v88 = vpack.c.b16 %v87, %v86
  %v153 = vunpack.c.l.b16 %v20
  %v154 = vunpack.c.h.b16 %v20
  %v155 = vunpack.c.l.b16 %v21
  %v156 = vunpack.c.h.b16 %v21
  %v157 = vunpack.c.l.b16 %v22
  %v158 = vunpack.c.h.b16 %v22
  %v159 = vunpack.c.l.b16 %v23
  %v160 = vunpack.c.h.b16 %v23
  %v161 = vunpack.c.l.b16 %v24
  %v162 = vunpack.c.h.b16 %v24
  %v163 = vunpack.c.l.b16 %v25
  %v164 = vunpack.c.h.b16 %v25
  %v165 = vunpack.c.l.b16 %v26
  %v166 = vunpack.c.h.b16 %v26
  %v167 = vunpack.c.l.b16 %v27
  %v168 = vunpack.c.h.b16 %v27
  %v169 = vunpack.c.l.b16 %v28
  %v170 = vunpack.c.h.b16 %v28
  %v171 = vunpack.c.l.b16 %v29
  %v172 = vunpack.c.h.b16 %v29
  %v173 = vunpack.c.l.b16 %v30
  %v174 = vunpack.c.h.b16 %v30
  %v175 = vunpack.c.l.b16 %v31
  %v176 = vunpack.c.h.b16 %v31
  %v177 = vunpack.c.l.b16 %v32
  %v178 = vunpack.c.h.b16 %v32
  %v179 = vunpack.c.l.b16 %v33
  %v180 = vunpack.c.h.b16 %v33
  %v181 = vunpack.c.l.b16 %v34
  %v182 = vunpack.c.h.b16 %v34
  %v183 = vunpack.c.l.b16 %v35
  %v184 = vunpack.c.h.b16 %v35
  %v185 = vunpack.c.l.b16 %v36
  %v186 = vunpack.c.h.b16 %v36
  %v187 = vunpack.c.l.b16 %v37
  %v188 = vunpack.c.h.b16 %v37
  %v189 = vunpack.c.l.b16 %v38
  %v190 = vunpack.c.h.b16 %v38
  %v191 = vunpack.c.l.b16 %v39
  %v192 = vunpack.c.h.b16 %v39
  %v193 = vunpack.c.l.b16 %v40
  %v194 = vunpack.c.h.b16 %v40
  %v195 = vunpack.c.l.b16 %v41
  %v196 = vunpack.c.h.b16 %v41
  %v197 = vunpack.c.l.b16 %v42
  %v198 = vunpack.c.h.b16 %v42
  %v199 = vunpack.c.l.b16 %v43
  %v200 = vunpack.c.h.b16 %v43
  %v201 = vunpack.c.l.b16 %v44
  %v202 = vunpack.c.h.b16 %v44
  %v203 = vunpack.c.l.b16 %v45
  %v204 = vunpack.c.h.b16 %v45
  %v205 = vunpack.c.l.b16 %v46
  %v206 = vunpack.c.h.b16 %v46
  %v207 = vunpack.c.l.b16 %v47
  %v208 = vunpack.c.h.b16 %v47
  %v209 = vunpack.c.l.b16 %v48
  %v210 = vunpack.c.h.b16 %v48
  %v211 = vunpack.c.l.b16 %v49
  %v212 = vunpack.c.h.b16 %v49
  %v213 = vunpack.c.l.b16 %v50
  %v214 = vunpack.c.h.b16 %v50
  %v215 = vunpack.c.l.b16 %v51
  %v216 = vunpack.c.h.b16 %v51
  %v217 = vunpack.c.l.b16 %v52
  %v218 = vunpack.c.h.b16 %v52
  %v219 = vunpack.c.l.b16 %v53
  %v220 = vunpack.c.h.b16 %v53
  %v221 = vunpack.c.l.b16 %v54
  %v222 = vunpack.c.h.b16 %v54
  %v223 = vunpack.c.l.b16 %v55
  %v224 = vunpack.c.h.b16 %v55
  %v225 = vunpack.c.l.b16 %v56
  %v226 = vunpack.c.h.b16 %v56
  %v227 = vunpack.c.l.b16 %v57
  %v228 = vunpack.c.h.b16 %v57
  %v229 = vunpack.c.l.b16 %v58
  %v230 = vunpack.c.h.b16 %v58
  %v231 = vunpack.c.l.b16 %v59
  %v232 = vunpack.c.h.b16 %v59
  %v233 = vunpack.c.l.b16 %v60
  %v234 = vunpack.c.h.b16 %v60
  %v235 = vunpack.c.l.b16 %v61
  %v236 = vunpack.c.h.b16 %v61
  %v237 = vunpack.c.l.b16 %v62
  %v238 = vunpack.c.h.b16 %v62
  %v239 = vunpack.c.l.b16 %v63
  %v240 = vunpack.c.h.b16 %v63
  %v241 = vunpack.c.l.b16 %v64
  %v242 = vunpack.c.h.b16 %v64
  %v243 = vunpack.c.l.b16 %v65
  %v244 = vunpack.c.h.b16 %v65
  %v245 = vunpack.c.l.b16 %v66
  %v246 = vunpack.c.h.b16 %v66
  %v247 = vunpack.c.l.b16 %v67
  %v248 = vunpack.c.h.b16 %v67
  %v249 = vunpack.c.l.b16 %v68
  %v250 = vunpack.c.h.b16 %v68
  %v251 = vunpack.c.l.b16 %v69
  %v252 = vunpack.c.h.b16 %v69
  %v253 = vunpack.c.l.b16 %v70
  %v254 = vunpack.c.h.b16 %v70
  %v255 = vunpack.c.l.b16 %v71
  %v256 = vunpack.c.h.b16 %v71
  %v257 = vunpack.c.l.b16 %v72
  %v258 = vunpack.c.h.b16 %v72
  %v259 = vunpack.c.l.b16 %v73
  %v260 = vunpack.c.h.b16 %v73
  %v261 = vunpack.c.l.b16 %v74
  %v262 = vunpack.c.h.b16 %v74
  %v263 = vunpack.c.l.b16 %v75
  %v264 = vunpack.c.h.b16 %v75
  %v265 = vunpack.c.l.b16 %v76
  %v266 = vunpack.c.h.b16 %v76
  %v267 = vunpack.c.l.b16 %v77
  %v268 = vunpack.c.h.b16 %v77
  %v269 = vunpack.c.l.b16 %v78
  %v270 = vunpack.c.h.b16 %v78
  %v271 = vunpack.c.l.b16 %v79
  %v272 = vunpack.c.h.b16 %v79
  %v273 = vunpack.c.l.b16 %v80
  %v274 = vunpack.c.h.b16 %v80
  %v275 = vunpack.c.l.b16 %v81
  %v276 = vunpack.c.h.b16 %v81
  %v277 = vunpack.c.l.b16 %v82
  %v278 = vunpack.c.h.b16 %v82
  %v279 = vunpack.c.l.b16 %v83
  %v280 = vunpack.c.h.b16 %v83
  %v281 = vpack.c.b16 %v185, %v153
  %v282 = vpack.c.b16 %v186, %v154
  %v283 = vpack.c.b16 %v187, %v155
  %v284 = vpack.c.b16 %v188, %v156
  %v285 = vpack.c.b16 %v189, %v157
  %v286 = vpack.c.b16 %v190, %v158
  %v287 = vpack.c.b16 %v191, %v159
  %v288 = vpack.c.b16 %v192, %v160
  %v289 = vpack.c.b16 %v193, %v161
  %v290 = vpack.c.b16 %v194, %v162
  %v291 = vpack.c.b16 %v195, %v163
  %v292 = vpack.c.b16 %v196, %v164
  %v293 = vpack.c.b16 %v197, %v165
  %v294 = vpack.c.b16 %v198, %v166
  %v295 = vpack.c.b16 %v199, %v167
  %v296 = vpack.c.b16 %v200, %v168
  %v297 = vpack.c.b16 %v201, %v169
  %v298 = vpack.c.b16 %v202, %v170
  %v299 = vpack.c.b16 %v203, %v171
  %v300 = vpack.c.b16 %v204, %v172
  %v301 = vpack.c.b16 %v205, %v173
  %v302 = vpack.c.b16 %v206, %v174
  %v303 = vpack.c.b16 %v207, %v175
  %v304 = vpack.c.b16 %v208, %v176
  %v305 = vpack.c.b16 %v209, %v177
  %v306 = vpack.c.b16 %v210, %v178
  %v307 = vpack.c.b16 %v211, %v179
  %v308 = vpack.c.b16 %v212, %v180
  %v309 = vpack.c.b16 %v213, %v181
  %v310 = vpack.c.b16 %v214, %v182
  %v311 = vpack.c.b16 %v215, %v183
  %v312 = vpack.c.b16 %v216, %v184
  %v313 = vpack.c.b16 %v249, %v217
  %v314 = vpack.c.b16 %v250, %v218
  %v315 = vpack.c.b16 %v251, %v219
  %v316 = vpack.c.b16 %v252, %v220
  %v317 = vpack.c.b16 %v253, %v221
  %v318 = vpack.c.b16 %v254, %v222
  %v319 = vpack.c.b16 %v255, %v223
  %v320 = vpack.c.b16 %v256, %v224
  %v321 = vpack.c.b16 %v257, %v225
  %v322 = vpack.c.b16 %v258, %v226
  %v323 = vpack.c.b16 %v259, %v227
  %v324 = vpack.c.b16 %v260, %v228
  %v325 = vpack.c.b16 %v261, %v229
  %v326 = vpack.c.b16 %v262, %v230
  %v327 = vpack.c.b16 %v263, %v231
  %v328 = vpack.c.b16 %v264, %v232
  %v329 = vpack.c.b16 %v265, %v233
  %v330 = vpack.c.b16 %v266, %v234
  %v331 = vpack.c.b16 %v267, %v235
  %v332 = vpack.c.b16 %v268, %v236
  %v333 = vpack.c.b16 %v269, %v237
  %v334 = vpack.c.b16 %v270, %v238
  %v335 = vpack.c.b16 %v271, %v239
  %v336 = vpack.c.b16 %v272, %v240
  %v337 = vpack.c.b16 %v273, %v241
  %v338 = vpack.c.b16 %v274, %v242
  %v339 = vpack.c.b16 %v275, %v243
  %v340 = vpack.c.b16 %v276, %v244
  %v341 = vpack.c.b16 %v277, %v245
  %v342 = vpack.c.b16 %v278, %v246
  %v343 = vpack.c.b16 %v279, %v247
  %v344 = vpack.c.b16 %v280, %v248
  %vm377 = vcmask 220160
  %v379 = vsel %vm377, %v88, 0
  %vm381 = vcmask 1044480
  %vm382 = vcmask 1045504
  %v383 = vsel %vm381, 4294967295, 65535
  %v384 = vsel %vm382, %v383, 0
  %v386 = vand.u32 %v313, %v384
  %v389 = vand.u32 %v314, %v384
  %v392 = vand.u32 %v315, %v384
  %v395 = vand.u32 %v316, %v384
  %v398 = vand.u32 %v317, %v384
  %v401 = vand.u32 %v318, %v384
  %v404 = vand.u32 %v319, %v384
  %v407 = vand.u32 %v320, %v384
  %v410 = vand.u32 %v321, %v384
  %v413 = vand.u32 %v322, %v384
  %v416 = vand.u32 %v323, %v384
  %v419 = vand.u32 %v324, %v384
  %v422 = vand.u32 %v325, %v384
  %v425 = vand.u32 %v326, %v384
  %v428 = vand.u32 %v327, %v384
  %v431 = vand.u32 %v328, %v384
  %v434 = vand.u32 %v329, %v384
  %v437 = vand.u32 %v330, %v384
  %v440 = vand.u32 %v331, %v384
  %v443 = vand.u32 %v332, %v384
  %v446 = vand.u32 %v333, %v384
  %v449 = vand.u32 %v334, %v384
  %v452 = vand.u32 %v335, %v384
  %v455 = vand.u32 %v336, %v384
  %v458 = vand.u32 %v337, %v384
  %v461 = vand.u32 %v338, %v384
  %v464 = vand.u32 %v339, %v384
  %v467 = vand.u32 %v340, %v384
  %v470 = vand.u32 %v341, %v384
  %v473 = vand.u32 %v342, %v384
  %v476 = vand.u32 %v343, %v384
  %v479 = vand.u32 %v344, %v384
  %481 = vmatprep.subr.bf16.mxu0 %v282
  %482 = vmatpush1.bf16.msra.mxu0 %v281
  %483 = vmatprep.subr.bf16.mxu0 %v389
  %484 = vmatpush1.bf16.msra.mxu0 %v386
  %485 = vmatprep.subr.bf16.mxu0 0
  %486 = vmatpush1.bf16.msra.mxu0 0
  %487 = vmatprep.subr.bf16.mxu0 0
  %488 = vmatpush1.bf16.msra.mxu0 0
  %489 = vmatprep.subr.bf16.mxu0 0
  %490 = vmatpush1.bf16.msra.mxu0 0
  %491 = vmatprep.subr.bf16.mxu0 0
  %492 = vmatpush1.bf16.msra.mxu0 0
  %493 = vmatprep.subr.bf16.mxu0 0
  %494 = vmatpush1.bf16.msra.mxu0 0
  %495 = vmatprep.subr.bf16.mxu0 0
  %496 = vmatpush1.bf16.msra.mxu0 0
  %497 = vmatprep.subr.bf16.mxu0 0
  %498 = vmatpush1.bf16.msra.mxu0 0
  %499 = vmatprep.subr.bf16.mxu0 0
  %500 = vmatpush1.bf16.msra.mxu0 0
  %501 = vmatprep.subr.bf16.mxu0 0
  %502 = vmatpush1.bf16.msra.mxu0 0
  %503 = vmatprep.subr.bf16.mxu0 0
  %504 = vmatpush1.bf16.msra.mxu0 0
  %505 = vmatprep.subr.bf16.mxu0 0
  %506 = vmatpush1.bf16.msra.mxu0 0
  %507 = vmatprep.subr.bf16.mxu0 0
  %508 = vmatpush1.bf16.msra.mxu0 0
  %509 = vmatprep.subr.bf16.mxu0 0
  %510 = vmatpush1.bf16.msra.mxu0 0
  %511 = vmatprep.subr.bf16.mxu0 0
  %512 = vmatpush1.bf16.msra.mxu0 0
  %513 = vmatprep.mubr.bf16.mxu0 0
  %514 = vmatmul.mubr.bf16.gmra.mrb[0].mxu0 %v379
  %v515 = vpop.f32.mrb[0].mxu0
  %v516 = vadd.f32 0.0, %v515
  %v517 = vpop.f32.mrb[0].mxu0
  %v518 = vadd.f32 0.0, %v517
  %v519 = vpop.f32.mrb[0].mxu0
  %v520 = vadd.f32 0.0, %v519
  %v521 = vpop.f32.mrb[0].mxu0
  %v522 = vadd.f32 0.0, %v521
  %523 = vdwg.mxu0
  %524 = vmatprep.subr.bf16.mxu0 %v284
  %525 = vmatpush1.bf16.msra.mxu0 %v283
  %526 = vmatprep.subr.bf16.mxu0 %v395
  %527 = vmatpush1.bf16.msra.mxu0 %v392
  %528 = vmatprep.subr.bf16.mxu0 0
  %529 = vmatpush1.bf16.msra.mxu0 0
  %530 = vmatprep.subr.bf16.mxu0 0
  %531 = vmatpush1.bf16.msra.mxu0 0
  %532 = vmatprep.subr.bf16.mxu0 0
  %533 = vmatpush1.bf16.msra.mxu0 0
  %534 = vmatprep.subr.bf16.mxu0 0
  %535 = vmatpush1.bf16.msra.mxu0 0
  %536 = vmatprep.subr.bf16.mxu0 0
  %537 = vmatpush1.bf16.msra.mxu0 0
  %538 = vmatprep.subr.bf16.mxu0 0
  %539 = vmatpush1.bf16.msra.mxu0 0
  %540 = vmatprep.subr.bf16.mxu0 0
  %541 = vmatpush1.bf16.msra.mxu0 0
  %542 = vmatprep.subr.bf16.mxu0 0
  %543 = vmatpush1.bf16.msra.mxu0 0
  %544 = vmatprep.subr.bf16.mxu0 0
  %545 = vmatpush1.bf16.msra.mxu0 0
  %546 = vmatprep.subr.bf16.mxu0 0
  %547 = vmatpush1.bf16.msra.mxu0 0
  %548 = vmatprep.subr.bf16.mxu0 0
  %549 = vmatpush1.bf16.msra.mxu0 0
  %550 = vmatprep.subr.bf16.mxu0 0
  %551 = vmatpush1.bf16.msra.mxu0 0
  %552 = vmatprep.subr.bf16.mxu0 0
  %553 = vmatpush1.bf16.msra.mxu0 0
  %554 = vmatprep.subr.bf16.mxu0 0
  %555 = vmatpush1.bf16.msra.mxu0 0
  %556 = vmatprep.mubr.bf16.mxu0 0
  %557 = vmatmul.mubr.bf16.gmra.mrb[0].mxu0 %v379
  %v558 = vpop.f32.mrb[0].mxu0
  %v559 = vadd.f32 0.0, %v558
  %v560 = vpop.f32.mrb[0].mxu0
  %v561 = vadd.f32 0.0, %v560
  %v562 = vpop.f32.mrb[0].mxu0
  %v563 = vadd.f32 0.0, %v562
  %v564 = vpop.f32.mrb[0].mxu0
  %v565 = vadd.f32 0.0, %v564
  %566 = vdwg.mxu0
  %567 = vmatprep.subr.bf16.mxu0 %v286
  %568 = vmatpush1.bf16.msra.mxu0 %v285
  %569 = vmatprep.subr.bf16.mxu0 %v401
  %570 = vmatpush1.bf16.msra.mxu0 %v398
  %571 = vmatprep.subr.bf16.mxu0 0
  %572 = vmatpush1.bf16.msra.mxu0 0
  %573 = vmatprep.subr.bf16.mxu0 0
  %574 = vmatpush1.bf16.msra.mxu0 0
  %575 = vmatprep.subr.bf16.mxu0 0
  %576 = vmatpush1.bf16.msra.mxu0 0
  %577 = vmatprep.subr.bf16.mxu0 0
  %578 = vmatpush1.bf16.msra.mxu0 0
  %579 = vmatprep.subr.bf16.mxu0 0
  %580 = vmatpush1.bf16.msra.mxu0 0
  %581 = vmatprep.subr.bf16.mxu0 0
  %582 = vmatpush1.bf16.msra.mxu0 0
  %583 = vmatprep.subr.bf16.mxu0 0
  %584 = vmatpush1.bf16.msra.mxu0 0
  %585 = vmatprep.subr.bf16.mxu0 0
  %586 = vmatpush1.bf16.msra.mxu0 0
  %587 = vmatprep.subr.bf16.mxu0 0
  %588 = vmatpush1.bf16.msra.mxu0 0
  %589 = vmatprep.subr.bf16.mxu0 0
  %590 = vmatpush1.bf16.msra.mxu0 0
  %591 = vmatprep.subr.bf16.mxu0 0
  %592 = vmatpush1.bf16.msra.mxu0 0
  %593 = vmatprep.subr.bf16.mxu0 0
  %594 = vmatpush1.bf16.msra.mxu0 0
  %595 = vmatprep.subr.bf16.mxu0 0
  %596 = vmatpush1.bf16.msra.mxu0 0
  %597 = vmatprep.subr.bf16.mxu0 0
  %598 = vmatpush1.bf16.msra.mxu0 0
  %599 = vmatprep.mubr.bf16.mxu0 0
  %600 = vmatmul.mubr.bf16.gmra.mrb[0].mxu0 %v379
  %v601 = vpop.f32.mrb[0].mxu0
  %v602 = vadd.f32 0.0, %v601
  %v603 = vpop.f32.mrb[0].mxu0
  %v604 = vadd.f32 0.0, %v603
  %v605 = vpop.f32.mrb[0].mxu0
  %v606 = vadd.f32 0.0, %v605
  %v607 = vpop.f32.mrb[0].mxu0
  %v608 = vadd.f32 0.0, %v607
  %609 = vdwg.mxu0
  %610 = vmatprep.subr.bf16.mxu0 %v288
  %611 = vmatpush1.bf16.msra.mxu0 %v287
  %612 = vmatprep.subr.bf16.mxu0 %v407
  %613 = vmatpush1.bf16.msra.mxu0 %v404
  %614 = vmatprep.subr.bf16.mxu0 0
  %615 = vmatpush1.bf16.msra.mxu0 0
  %616 = vmatprep.subr.bf16.mxu0 0
  %617 = vmatpush1.bf16.msra.mxu0 0
  %618 = vmatprep.subr.bf16.mxu0 0
  %619 = vmatpush1.bf16.msra.mxu0 0
  %620 = vmatprep.subr.bf16.mxu0 0
  %621 = vmatpush1.bf16.msra.mxu0 0
  %622 = vmatprep.subr.bf16.mxu0 0
  %623 = vmatpush1.bf16.msra.mxu0 0
  %624 = vmatprep.subr.bf16.mxu0 0
  %625 = vmatpush1.bf16.msra.mxu0 0
  %626 = vmatprep.subr.bf16.mxu0 0
  %627 = vmatpush1.bf16.msra.mxu0 0
  %628 = vmatprep.subr.bf16.mxu0 0
  %629 = vmatpush1.bf16.msra.mxu0 0
  %630 = vmatprep.subr.bf16.mxu0 0
  %631 = vmatpush1.bf16.msra.mxu0 0
  %632 = vmatprep.subr.bf16.mxu0 0
  %633 = vmatpush1.bf16.msra.mxu0 0
  %634 = vmatprep.subr.bf16.mxu0 0
  %635 = vmatpush1.bf16.msra.mxu0 0
  %636 = vmatprep.subr.bf16.mxu0 0
  %637 = vmatpush1.bf16.msra.mxu0 0
  %638 = vmatprep.subr.bf16.mxu0 0
  %639 = vmatpush1.bf16.msra.mxu0 0
  %640 = vmatprep.subr.bf16.mxu0 0
  %641 = vmatpush1.bf16.msra.mxu0 0
  %642 = vmatprep.mubr.bf16.mxu0 0
  %643 = vmatmul.mubr.bf16.gmra.mrb[0].mxu0 %v379
  %v644 = vpop.f32.mrb[0].mxu0
  %v645 = vadd.f32 0.0, %v644
  %v646 = vpop.f32.mrb[0].mxu0
  %v647 = vadd.f32 0.0, %v646
  %v648 = vpop.f32.mrb[0].mxu0
  %v649 = vadd.f32 0.0, %v648
  %v650 = vpop.f32.mrb[0].mxu0
  %v651 = vadd.f32 0.0, %v650
  %652 = vdwg.mxu0
  %653 = vmatprep.subr.bf16.mxu0 %v290
  %654 = vmatpush1.bf16.msra.mxu0 %v289
  %655 = vmatprep.subr.bf16.mxu0 %v413
  %656 = vmatpush1.bf16.msra.mxu0 %v410
  %657 = vmatprep.subr.bf16.mxu0 0
  %658 = vmatpush1.bf16.msra.mxu0 0
  %659 = vmatprep.subr.bf16.mxu0 0
  %660 = vmatpush1.bf16.msra.mxu0 0
  %661 = vmatprep.subr.bf16.mxu0 0
  %662 = vmatpush1.bf16.msra.mxu0 0
  %663 = vmatprep.subr.bf16.mxu0 0
  %664 = vmatpush1.bf16.msra.mxu0 0
  %665 = vmatprep.subr.bf16.mxu0 0
  %666 = vmatpush1.bf16.msra.mxu0 0
  %667 = vmatprep.subr.bf16.mxu0 0
  %668 = vmatpush1.bf16.msra.mxu0 0
  %669 = vmatprep.subr.bf16.mxu0 0
  %670 = vmatpush1.bf16.msra.mxu0 0
  %671 = vmatprep.subr.bf16.mxu0 0
  %672 = vmatpush1.bf16.msra.mxu0 0
  %673 = vmatprep.subr.bf16.mxu0 0
  %674 = vmatpush1.bf16.msra.mxu0 0
  %675 = vmatprep.subr.bf16.mxu0 0
  %676 = vmatpush1.bf16.msra.mxu0 0
  %677 = vmatprep.subr.bf16.mxu0 0
  %678 = vmatpush1.bf16.msra.mxu0 0
  %679 = vmatprep.subr.bf16.mxu0 0
  %680 = vmatpush1.bf16.msra.mxu0 0
  %681 = vmatprep.subr.bf16.mxu0 0
  %682 = vmatpush1.bf16.msra.mxu0 0
  %683 = vmatprep.subr.bf16.mxu0 0
  %684 = vmatpush1.bf16.msra.mxu0 0
  %685 = vmatprep.mubr.bf16.mxu0 0
  %686 = vmatmul.mubr.bf16.gmra.mrb[0].mxu0 %v379
  %v687 = vpop.f32.mrb[0].mxu0
  %v688 = vadd.f32 0.0, %v687
  %v689 = vpop.f32.mrb[0].mxu0
  %v690 = vadd.f32 0.0, %v689
  %v691 = vpop.f32.mrb[0].mxu0
  %v692 = vadd.f32 0.0, %v691
  %v693 = vpop.f32.mrb[0].mxu0
  %v694 = vadd.f32 0.0, %v693
  %695 = vdwg.mxu0
  %696 = vmatprep.subr.bf16.mxu0 %v292
  %697 = vmatpush1.bf16.msra.mxu0 %v291
  %698 = vmatprep.subr.bf16.mxu0 %v419
  %699 = vmatpush1.bf16.msra.mxu0 %v416
  %700 = vmatprep.subr.bf16.mxu0 0
  %701 = vmatpush1.bf16.msra.mxu0 0
  %702 = vmatprep.subr.bf16.mxu0 0
  %703 = vmatpush1.bf16.msra.mxu0 0
  %704 = vmatprep.subr.bf16.mxu0 0
  %705 = vmatpush1.bf16.msra.mxu0 0
  %706 = vmatprep.subr.bf16.mxu0 0
  %707 = vmatpush1.bf16.msra.mxu0 0
  %708 = vmatprep.subr.bf16.mxu0 0
  %709 = vmatpush1.bf16.msra.mxu0 0
  %710 = vmatprep.subr.bf16.mxu0 0
  %711 = vmatpush1.bf16.msra.mxu0 0
  %712 = vmatprep.subr.bf16.mxu0 0
  %713 = vmatpush1.bf16.msra.mxu0 0
  %714 = vmatprep.subr.bf16.mxu0 0
  %715 = vmatpush1.bf16.msra.mxu0 0
  %716 = vmatprep.subr.bf16.mxu0 0
  %717 = vmatpush1.bf16.msra.mxu0 0
  %718 = vmatprep.subr.bf16.mxu0 0
  %719 = vmatpush1.bf16.msra.mxu0 0
  %720 = vmatprep.subr.bf16.mxu0 0
  %721 = vmatpush1.bf16.msra.mxu0 0
  %722 = vmatprep.subr.bf16.mxu0 0
  %723 = vmatpush1.bf16.msra.mxu0 0
  %724 = vmatprep.subr.bf16.mxu0 0
  %725 = vmatpush1.bf16.msra.mxu0 0
  %726 = vmatprep.subr.bf16.mxu0 0
  %727 = vmatpush1.bf16.msra.mxu0 0
  %728 = vmatprep.mubr.bf16.mxu0 0
  %729 = vmatmul.mubr.bf16.gmra.mrb[0].mxu0 %v379
  %v730 = vpop.f32.mrb[0].mxu0
  %v731 = vadd.f32 0.0, %v730
  %v732 = vpop.f32.mrb[0].mxu0
  %v733 = vadd.f32 0.0, %v732
  %v734 = vpop.f32.mrb[0].mxu0
  %v735 = vadd.f32 0.0, %v734
  %v736 = vpop.f32.mrb[0].mxu0
  %v737 = vadd.f32 0.0, %v736
  %738 = vdwg.mxu0
  %739 = vmatprep.subr.bf16.mxu0 %v294
  %740 = vmatpush1.bf16.msra.mxu0 %v293
  %741 = vmatprep.subr.bf16.mxu0 %v425
  %742 = vmatpush1.bf16.msra.mxu0 %v422
  %743 = vmatprep.subr.bf16.mxu0 0
  %744 = vmatpush1.bf16.msra.mxu0 0
  %745 = vmatprep.subr.bf16.mxu0 0
  %746 = vmatpush1.bf16.msra.mxu0 0
  %747 = vmatprep.subr.bf16.mxu0 0
  %748 = vmatpush1.bf16.msra.mxu0 0
  %749 = vmatprep.subr.bf16.mxu0 0
  %750 = vmatpush1.bf16.msra.mxu0 0
  %751 = vmatprep.subr.bf16.mxu0 0
  %752 = vmatpush1.bf16.msra.mxu0 0
  %753 = vmatprep.subr.bf16.mxu0 0
  %754 = vmatpush1.bf16.msra.mxu0 0
  %755 = vmatprep.subr.bf16.mxu0 0
  %756 = vmatpush1.bf16.msra.mxu0 0
  %757 = vmatprep.subr.bf16.mxu0 0
  %758 = vmatpush1.bf16.msra.mxu0 0
  %759 = vmatprep.subr.bf16.mxu0 0
  %760 = vmatpush1.bf16.msra.mxu0 0
  %761 = vmatprep.subr.bf16.mxu0 0
  %762 = vmatpush1.bf16.msra.mxu0 0
  %763 = vmatprep.subr.bf16.mxu0 0
  %764 = vmatpush1.bf16.msra.mxu0 0
  %765 = vmatprep.subr.bf16.mxu0 0
  %766 = vmatpush1.bf16.msra.mxu0 0
  %767 = vmatprep.subr.bf16.mxu0 0
  %768 = vmatpush1.bf16.msra.mxu0 0
  %769 = vmatprep.subr.bf16.mxu0 0
  %770 = vmatpush1.bf16.msra.mxu0 0
  %771 = vmatprep.mubr.bf16.mxu0 0
  %772 = vmatmul.mubr.bf16.gmra.mrb[0].mxu0 %v379
  %v773 = vpop.f32.mrb[0].mxu0
  %v774 = vadd.f32 0.0, %v773
  %v775 = vpop.f32.mrb[0].mxu0
  %v776 = vadd.f32 0.0, %v775
  %v777 = vpop.f32.mrb[0].mxu0
  %v778 = vadd.f32 0.0, %v777
  %v779 = vpop.f32.mrb[0].mxu0
  %v780 = vadd.f32 0.0, %v779
  %781 = vdwg.mxu0
  %782 = vmatprep.subr.bf16.mxu0 %v296
  %783 = vmatpush1.bf16.msra.mxu0 %v295
  %784 = vmatprep.subr.bf16.mxu0 %v431
  %785 = vmatpush1.bf16.msra.mxu0 %v428
  %786 = vmatprep.subr.bf16.mxu0 0
  %787 = vmatpush1.bf16.msra.mxu0 0
  %788 = vmatprep.subr.bf16.mxu0 0
  %789 = vmatpush1.bf16.msra.mxu0 0
  %790 = vmatprep.subr.bf16.mxu0 0
  %791 = vmatpush1.bf16.msra.mxu0 0
  %792 = vmatprep.subr.bf16.mxu0 0
  %793 = vmatpush1.bf16.msra.mxu0 0
  %794 = vmatprep.subr.bf16.mxu0 0
  %795 = vmatpush1.bf16.msra.mxu0 0
  %796 = vmatprep.subr.bf16.mxu0 0
  %797 = vmatpush1.bf16.msra.mxu0 0
  %798 = vmatprep.subr.bf16.mxu0 0
  %799 = vmatpush1.bf16.msra.mxu0 0
  %800 = vmatprep.subr.bf16.mxu0 0
  %801 = vmatpush1.bf16.msra.mxu0 0
  %802 = vmatprep.subr.bf16.mxu0 0
  %803 = vmatpush1.bf16.msra.mxu0 0
  %804 = vmatprep.subr.bf16.mxu0 0
  %805 = vmatpush1.bf16.msra.mxu0 0
  %806 = vmatprep.subr.bf16.mxu0 0
  %807 = vmatpush1.bf16.msra.mxu0 0
  %808 = vmatprep.subr.bf16.mxu0 0
  %809 = vmatpush1.bf16.msra.mxu0 0
  %810 = vmatprep.subr.bf16.mxu0 0
  %811 = vmatpush1.bf16.msra.mxu0 0
  %812 = vmatprep.subr.bf16.mxu0 0
  %813 = vmatpush1.bf16.msra.mxu0 0
  %814 = vmatprep.mubr.bf16.mxu0 0
  %815 = vmatmul.mubr.bf16.gmra.mrb[0].mxu0 %v379
  %v816 = vpop.f32.mrb[0].mxu0
  %v817 = vadd.f32 0.0, %v816
  %v818 = vpop.f32.mrb[0].mxu0
  %v819 = vadd.f32 0.0, %v818
  %v820 = vpop.f32.mrb[0].mxu0
  %v821 = vadd.f32 0.0, %v820
  %v822 = vpop.f32.mrb[0].mxu0
  %v823 = vadd.f32 0.0, %v822
  %824 = vdwg.mxu0
  %825 = vmatprep.subr.bf16.mxu0 %v298
  %826 = vmatpush1.bf16.msra.mxu0 %v297
  %827 = vmatprep.subr.bf16.mxu0 %v437
  %828 = vmatpush1.bf16.msra.mxu0 %v434
  %829 = vmatprep.subr.bf16.mxu0 0
  %830 = vmatpush1.bf16.msra.mxu0 0
  %831 = vmatprep.subr.bf16.mxu0 0
  %832 = vmatpush1.bf16.msra.mxu0 0
  %833 = vmatprep.subr.bf16.mxu0 0
  %834 = vmatpush1.bf16.msra.mxu0 0
  %835 = vmatprep.subr.bf16.mxu0 0
  %836 = vmatpush1.bf16.msra.mxu0 0
  %837 = vmatprep.subr.bf16.mxu0 0
  %838 = vmatpush1.bf16.msra.mxu0 0
  %839 = vmatprep.subr.bf16.mxu0 0
  %840 = vmatpush1.bf16.msra.mxu0 0
  %841 = vmatprep.subr.bf16.mxu0 0
  %842 = vmatpush1.bf16.msra.mxu0 0
  %843 = vmatprep.subr.bf16.mxu0 0
  %844 = vmatpush1.bf16.msra.mxu0 0
  %845 = vmatprep.subr.bf16.mxu0 0
  %846 = vmatpush1.bf16.msra.mxu0 0
  %847 = vmatprep.subr.bf16.mxu0 0
  %848 = vmatpush1.bf16.msra.mxu0 0
  %849 = vmatprep.subr.bf16.mxu0 0
  %850 = vmatpush1.bf16.msra.mxu0 0
  %851 = vmatprep.subr.bf16.mxu0 0
  %852 = vmatpush1.bf16.msra.mxu0 0
  %853 = vmatprep.subr.bf16.mxu0 0
  %854 = vmatpush1.bf16.msra.mxu0 0
  %855 = vmatprep.subr.bf16.mxu0 0
  %856 = vmatpush1.bf16.msra.mxu0 0
  %857 = vmatprep.mubr.bf16.mxu0 0
  %858 = vmatmul.mubr.bf16.gmra.mrb[0].mxu0 %v379
  %v859 = vpop.f32.mrb[0].mxu0
  %v860 = vadd.f32 0.0, %v859
  %v861 = vpop.f32.mrb[0].mxu0
  %v862 = vadd.f32 0.0, %v861
  %v863 = vpop.f32.mrb[0].mxu0
  %v864 = vadd.f32 0.0, %v863
  %v865 = vpop.f32.mrb[0].mxu0
  %v866 = vadd.f32 0.0, %v865
  %867 = vdwg.mxu0
  %868 = vmatprep.subr.bf16.mxu0 %v300
  %869 = vmatpush1.bf16.msra.mxu0 %v299
  %870 = vmatprep.subr.bf16.mxu0 %v443
  %871 = vmatpush1.bf16.msra.mxu0 %v440
  %872 = vmatprep.subr.bf16.mxu0 0
  %873 = vmatpush1.bf16.msra.mxu0 0
  %874 = vmatprep.subr.bf16.mxu0 0
  %875 = vmatpush1.bf16.msra.mxu0 0
  %876 = vmatprep.subr.bf16.mxu0 0
  %877 = vmatpush1.bf16.msra.mxu0 0
  %878 = vmatprep.subr.bf16.mxu0 0
  %879 = vmatpush1.bf16.msra.mxu0 0
  %880 = vmatprep.subr.bf16.mxu0 0
  %881 = vmatpush1.bf16.msra.mxu0 0
  %882 = vmatprep.subr.bf16.mxu0 0
  %883 = vmatpush1.bf16.msra.mxu0 0
  %884 = vmatprep.subr.bf16.mxu0 0
  %885 = vmatpush1.bf16.msra.mxu0 0
  %886 = vmatprep.subr.bf16.mxu0 0
  %887 = vmatpush1.bf16.msra.mxu0 0
  %888 = vmatprep.subr.bf16.mxu0 0
  %889 = vmatpush1.bf16.msra.mxu0 0
  %890 = vmatprep.subr.bf16.mxu0 0
  %891 = vmatpush1.bf16.msra.mxu0 0
  %892 = vmatprep.subr.bf16.mxu0 0
  %893 = vmatpush1.bf16.msra.mxu0 0
  %894 = vmatprep.subr.bf16.mxu0 0
  %895 = vmatpush1.bf16.msra.mxu0 0
  %896 = vmatprep.subr.bf16.mxu0 0
  %897 = vmatpush1.bf16.msra.mxu0 0
  %898 = vmatprep.subr.bf16.mxu0 0
  %899 = vmatpush1.bf16.msra.mxu0 0
  %900 = vmatprep.mubr.bf16.mxu0 0
  %901 = vmatmul.mubr.bf16.gmra.mrb[0].mxu0 %v379
  %v902 = vpop.f32.mrb[0].mxu0
  %v903 = vadd.f32 0.0, %v902
  %v904 = vpop.f32.mrb[0].mxu0
  %v905 = vadd.f32 0.0, %v904
  %v906 = vpop.f32.mrb[0].mxu0
  %v907 = vadd.f32 0.0, %v906
  %v908 = vpop.f32.mrb[0].mxu0
  %v909 = vadd.f32 0.0, %v908
  %910 = vdwg.mxu0
  %911 = vmatprep.subr.bf16.mxu0 %v302
  %912 = vmatpush1.bf16.msra.mxu0 %v301
  %913 = vmatprep.subr.bf16.mxu0 %v449
  %914 = vmatpush1.bf16.msra.mxu0 %v446
  %915 = vmatprep.subr.bf16.mxu0 0
  %916 = vmatpush1.bf16.msra.mxu0 0
  %917 = vmatprep.subr.bf16.mxu0 0
  %918 = vmatpush1.bf16.msra.mxu0 0
  %919 = vmatprep.subr.bf16.mxu0 0
  %920 = vmatpush1.bf16.msra.mxu0 0
  %921 = vmatprep.subr.bf16.mxu0 0
  %922 = vmatpush1.bf16.msra.mxu0 0
  %923 = vmatprep.subr.bf16.mxu0 0
  %924 = vmatpush1.bf16.msra.mxu0 0
  %925 = vmatprep.subr.bf16.mxu0 0
  %926 = vmatpush1.bf16.msra.mxu0 0
  %927 = vmatprep.subr.bf16.mxu0 0
  %928 = vmatpush1.bf16.msra.mxu0 0
  %929 = vmatprep.subr.bf16.mxu0 0
  %930 = vmatpush1.bf16.msra.mxu0 0
  %931 = vmatprep.subr.bf16.mxu0 0
  %932 = vmatpush1.bf16.msra.mxu0 0
  %933 = vmatprep.subr.bf16.mxu0 0
  %934 = vmatpush1.bf16.msra.mxu0 0
  %935 = vmatprep.subr.bf16.mxu0 0
  %936 = vmatpush1.bf16.msra.mxu0 0
  %937 = vmatprep.subr.bf16.mxu0 0
  %938 = vmatpush1.bf16.msra.mxu0 0
  %939 = vmatprep.subr.bf16.mxu0 0
  %940 = vmatpush1.bf16.msra.mxu0 0
  %941 = vmatprep.subr.bf16.mxu0 0
  %942 = vmatpush1.bf16.msra.mxu0 0
  %943 = vmatprep.mubr.bf16.mxu0 0
  %944 = vmatmul.mubr.bf16.gmra.mrb[0].mxu0 %v379
  %v945 = vpop.f32.mrb[0].mxu0
  %v946 = vadd.f32 0.0, %v945
  %v947 = vpop.f32.mrb[0].mxu0
  %v948 = vadd.f32 0.0, %v947
  %v949 = vpop.f32.mrb[0].mxu0
  %v950 = vadd.f32 0.0, %v949
  %v951 = vpop.f32.mrb[0].mxu0
  %v952 = vadd.f32 0.0, %v951
  %953 = vdwg.mxu0
  %954 = vmatprep.subr.bf16.mxu0 %v304
  %955 = vmatpush1.bf16.msra.mxu0 %v303
  %956 = vmatprep.subr.bf16.mxu0 %v455
  %957 = vmatpush1.bf16.msra.mxu0 %v452
  %958 = vmatprep.subr.bf16.mxu0 0
  %959 = vmatpush1.bf16.msra.mxu0 0
  %960 = vmatprep.subr.bf16.mxu0 0
  %961 = vmatpush1.bf16.msra.mxu0 0
  %962 = vmatprep.subr.bf16.mxu0 0
  %963 = vmatpush1.bf16.msra.mxu0 0
  %964 = vmatprep.subr.bf16.mxu0 0
  %965 = vmatpush1.bf16.msra.mxu0 0
  %966 = vmatprep.subr.bf16.mxu0 0
  %967 = vmatpush1.bf16.msra.mxu0 0
  %968 = vmatprep.subr.bf16.mxu0 0
  %969 = vmatpush1.bf16.msra.mxu0 0
  %970 = vmatprep.subr.bf16.mxu0 0
  %971 = vmatpush1.bf16.msra.mxu0 0
  %972 = vmatprep.subr.bf16.mxu0 0
  %973 = vmatpush1.bf16.msra.mxu0 0
  %974 = vmatprep.subr.bf16.mxu0 0
  %975 = vmatpush1.bf16.msra.mxu0 0
  %976 = vmatprep.subr.bf16.mxu0 0
  %977 = vmatpush1.bf16.msra.mxu0 0
  %978 = vmatprep.subr.bf16.mxu0 0
  %979 = vmatpush1.bf16.msra.mxu0 0
  %980 = vmatprep.subr.bf16.mxu0 0
  %981 = vmatpush1.bf16.msra.mxu0 0
  %982 = vmatprep.subr.bf16.mxu0 0
  %983 = vmatpush1.bf16.msra.mxu0 0
  %984 = vmatprep.subr.bf16.mxu0 0
  %985 = vmatpush1.bf16.msra.mxu0 0
  %986 = vmatprep.mubr.bf16.mxu0 0
  %987 = vmatmul.mubr.bf16.gmra.mrb[0].mxu0 %v379
  %v988 = vpop.f32.mrb[0].mxu0
  %v989 = vadd.f32 0.0, %v988
  %v990 = vpop.f32.mrb[0].mxu0
  %v991 = vadd.f32 0.0, %v990
  %v992 = vpop.f32.mrb[0].mxu0
  %v993 = vadd.f32 0.0, %v992
  %v994 = vpop.f32.mrb[0].mxu0
  %v995 = vadd.f32 0.0, %v994
  %996 = vdwg.mxu0
  %997 = vmatprep.subr.bf16.mxu0 %v306
  %998 = vmatpush1.bf16.msra.mxu0 %v305
  %999 = vmatprep.subr.bf16.mxu0 %v461
  %1000 = vmatpush1.bf16.msra.mxu0 %v458
  %1001 = vmatprep.subr.bf16.mxu0 0
  %1002 = vmatpush1.bf16.msra.mxu0 0
  %1003 = vmatprep.subr.bf16.mxu0 0
  %1004 = vmatpush1.bf16.msra.mxu0 0
  %1005 = vmatprep.subr.bf16.mxu0 0
  %1006 = vmatpush1.bf16.msra.mxu0 0
  %1007 = vmatprep.subr.bf16.mxu0 0
  %1008 = vmatpush1.bf16.msra.mxu0 0
  %1009 = vmatprep.subr.bf16.mxu0 0
  %1010 = vmatpush1.bf16.msra.mxu0 0
  %1011 = vmatprep.subr.bf16.mxu0 0
  %1012 = vmatpush1.bf16.msra.mxu0 0
  %1013 = vmatprep.subr.bf16.mxu0 0
  %1014 = vmatpush1.bf16.msra.mxu0 0
  %1015 = vmatprep.subr.bf16.mxu0 0
  %1016 = vmatpush1.bf16.msra.mxu0 0
  %1017 = vmatprep.subr.bf16.mxu0 0
  %1018 = vmatpush1.bf16.msra.mxu0 0
  %1019 = vmatprep.subr.bf16.mxu0 0
  %1020 = vmatpush1.bf16.msra.mxu0 0
  %1021 = vmatprep.subr.bf16.mxu0 0
  %1022 = vmatpush1.bf16.msra.mxu0 0
  %1023 = vmatprep.subr.bf16.mxu0 0
  %1024 = vmatpush1.bf16.msra.mxu0 0
  %1025 = vmatprep.subr.bf16.mxu0 0
  %1026 = vmatpush1.bf16.msra.mxu0 0
  %1027 = vmatprep.subr.bf16.mxu0 0
  %1028 = vmatpush1.bf16.msra.mxu0 0
  %1029 = vmatprep.mubr.bf16.mxu0 0
  %1030 = vmatmul.mubr.bf16.gmra.mrb[0].mxu0 %v379
  %v1031 = vpop.f32.mrb[0].mxu0
  %v1032 = vadd.f32 0.0, %v1031
  %v1033 = vpop.f32.mrb[0].mxu0
  %v1034 = vadd.f32 0.0, %v1033
  %v1035 = vpop.f32.mrb[0].mxu0
  %v1036 = vadd.f32 0.0, %v1035
  %v1037 = vpop.f32.mrb[0].mxu0
  %v1038 = vadd.f32 0.0, %v1037
  %1039 = vdwg.mxu0
  %1040 = vmatprep.subr.bf16.mxu0 %v308
  %1041 = vmatpush1.bf16.msra.mxu0 %v307
  %1042 = vmatprep.subr.bf16.mxu0 %v467
  %1043 = vmatpush1.bf16.msra.mxu0 %v464
  %1044 = vmatprep.subr.bf16.mxu0 0
  %1045 = vmatpush1.bf16.msra.mxu0 0
  %1046 = vmatprep.subr.bf16.mxu0 0
  %1047 = vmatpush1.bf16.msra.mxu0 0
  %1048 = vmatprep.subr.bf16.mxu0 0
  %1049 = vmatpush1.bf16.msra.mxu0 0
  %1050 = vmatprep.subr.bf16.mxu0 0
  %1051 = vmatpush1.bf16.msra.mxu0 0
  %1052 = vmatprep.subr.bf16.mxu0 0
  %1053 = vmatpush1.bf16.msra.mxu0 0
  %1054 = vmatprep.subr.bf16.mxu0 0
  %1055 = vmatpush1.bf16.msra.mxu0 0
  %1056 = vmatprep.subr.bf16.mxu0 0
  %1057 = vmatpush1.bf16.msra.mxu0 0
  %1058 = vmatprep.subr.bf16.mxu0 0
  %1059 = vmatpush1.bf16.msra.mxu0 0
  %1060 = vmatprep.subr.bf16.mxu0 0
  %1061 = vmatpush1.bf16.msra.mxu0 0
  %1062 = vmatprep.subr.bf16.mxu0 0
  %1063 = vmatpush1.bf16.msra.mxu0 0
  %1064 = vmatprep.subr.bf16.mxu0 0
  %1065 = vmatpush1.bf16.msra.mxu0 0
  %1066 = vmatprep.subr.bf16.mxu0 0
  %1067 = vmatpush1.bf16.msra.mxu0 0
  %1068 = vmatprep.subr.bf16.mxu0 0
  %1069 = vmatpush1.bf16.msra.mxu0 0
  %1070 = vmatprep.subr.bf16.mxu0 0
  %1071 = vmatpush1.bf16.msra.mxu0 0
  %1072 = vmatprep.mubr.bf16.mxu0 0
  %1073 = vmatmul.mubr.bf16.gmra.mrb[0].mxu0 %v379
  %v1074 = vpop.f32.mrb[0].mxu0
  %v1075 = vadd.f32 0.0, %v1074
  %v1076 = vpop.f32.mrb[0].mxu0
  %v1077 = vadd.f32 0.0, %v1076
  %v1078 = vpop.f32.mrb[0].mxu0
  %v1079 = vadd.f32 0.0, %v1078
  %v1080 = vpop.f32.mrb[0].mxu0
  %v1081 = vadd.f32 0.0, %v1080
  %1082 = vdwg.mxu0
  %1083 = vmatprep.subr.bf16.mxu0 %v310
  %1084 = vmatpush1.bf16.msra.mxu0 %v309
  %1085 = vmatprep.subr.bf16.mxu0 %v473
  %1086 = vmatpush1.bf16.msra.mxu0 %v470
  %1087 = vmatprep.subr.bf16.mxu0 0
  %1088 = vmatpush1.bf16.msra.mxu0 0
  %1089 = vmatprep.subr.bf16.mxu0 0
  %1090 = vmatpush1.bf16.msra.mxu0 0
  %1091 = vmatprep.subr.bf16.mxu0 0
  %1092 = vmatpush1.bf16.msra.mxu0 0
  %1093 = vmatprep.subr.bf16.mxu0 0
  %1094 = vmatpush1.bf16.msra.mxu0 0
  %1095 = vmatprep.subr.bf16.mxu0 0
  %1096 = vmatpush1.bf16.msra.mxu0 0
  %1097 = vmatprep.subr.bf16.mxu0 0
  %1098 = vmatpush1.bf16.msra.mxu0 0
  %1099 = vmatprep.subr.bf16.mxu0 0
  %1100 = vmatpush1.bf16.msra.mxu0 0
  %1101 = vmatprep.subr.bf16.mxu0 0
  %1102 = vmatpush1.bf16.msra.mxu0 0
  %1103 = vmatprep.subr.bf16.mxu0 0
  %1104 = vmatpush1.bf16.msra.mxu0 0
  %1105 = vmatprep.subr.bf16.mxu0 0
  %1106 = vmatpush1.bf16.msra.mxu0 0
  %1107 = vmatprep.subr.bf16.mxu0 0
  %1108 = vmatpush1.bf16.msra.mxu0 0
  %1109 = vmatprep.subr.bf16.mxu0 0
  %1110 = vmatpush1.bf16.msra.mxu0 0
  %1111 = vmatprep.subr.bf16.mxu0 0
  %1112 = vmatpush1.bf16.msra.mxu0 0
  %1113 = vmatprep.subr.bf16.mxu0 0
  %1114 = vmatpush1.bf16.msra.mxu0 0
  %1115 = vmatprep.mubr.bf16.mxu0 0
  %1116 = vmatmul.mubr.bf16.gmra.mrb[0].mxu0 %v379
  %v1117 = vpop.f32.mrb[0].mxu0
  %v1118 = vadd.f32 0.0, %v1117
  %v1119 = vpop.f32.mrb[0].mxu0
  %v1120 = vadd.f32 0.0, %v1119
  %v1121 = vpop.f32.mrb[0].mxu0
  %v1122 = vadd.f32 0.0, %v1121
  %v1123 = vpop.f32.mrb[0].mxu0
  %v1124 = vadd.f32 0.0, %v1123
  %1125 = vdwg.mxu0
  %1126 = vmatprep.subr.bf16.mxu0 %v312
  %1127 = vmatpush1.bf16.msra.mxu0 %v311
  %1128 = vmatprep.subr.bf16.mxu0 %v479
  %1129 = vmatpush1.bf16.msra.mxu0 %v476
  %1130 = vmatprep.subr.bf16.mxu0 0
  %1131 = vmatpush1.bf16.msra.mxu0 0
  %1132 = vmatprep.subr.bf16.mxu0 0
  %1133 = vmatpush1.bf16.msra.mxu0 0
  %1134 = vmatprep.subr.bf16.mxu0 0
  %1135 = vmatpush1.bf16.msra.mxu0 0
  %1136 = vmatprep.subr.bf16.mxu0 0
  %1137 = vmatpush1.bf16.msra.mxu0 0
  %1138 = vmatprep.subr.bf16.mxu0 0
  %1139 = vmatpush1.bf16.msra.mxu0 0
  %1140 = vmatprep.subr.bf16.mxu0 0
  %1141 = vmatpush1.bf16.msra.mxu0 0
  %1142 = vmatprep.subr.bf16.mxu0 0
  %1143 = vmatpush1.bf16.msra.mxu0 0
  %1144 = vmatprep.subr.bf16.mxu0 0
  %1145 = vmatpush1.bf16.msra.mxu0 0
  %1146 = vmatprep.subr.bf16.mxu0 0
  %1147 = vmatpush1.bf16.msra.mxu0 0
  %1148 = vmatprep.subr.bf16.mxu0 0
  %1149 = vmatpush1.bf16.msra.mxu0 0
  %1150 = vmatprep.subr.bf16.mxu0 0
  %1151 = vmatpush1.bf16.msra.mxu0 0
  %1152 = vmatprep.subr.bf16.mxu0 0
  %1153 = vmatpush1.bf16.msra.mxu0 0
  %1154 = vmatprep.subr.bf16.mxu0 0
  %1155 = vmatpush1.bf16.msra.mxu0 0
  %1156 = vmatprep.subr.bf16.mxu0 0
  %1157 = vmatpush1.bf16.msra.mxu0 0
  %1158 = vmatprep.mubr.bf16.mxu0 0
  %1159 = vmatmul.mubr.bf16.gmra.mrb[0].mxu0 %v379
  %v1160 = vpop.f32.mrb[0].mxu0
  %v1161 = vadd.f32 0.0, %v1160
  %v1162 = vpop.f32.mrb[0].mxu0
  %v1163 = vadd.f32 0.0, %v1162
  %v1164 = vpop.f32.mrb[0].mxu0
  %v1165 = vadd.f32 0.0, %v1164
  %v1166 = vpop.f32.mrb[0].mxu0
  %v1167 = vadd.f32 0.0, %v1166
  %1168 = vdwg.mxu0
  %v1169 = vmax.f32 %v516, %v688
  %v1170 = vmax.f32 %v518, %v690
  %v1171 = vmax.f32 %v559, %v731
  %v1172 = vmax.f32 %v561, %v733
  %v1173 = vmax.f32 %v602, %v774
  %v1174 = vmax.f32 %v604, %v776
  %v1175 = vmax.f32 %v645, %v817
  %v1176 = vmax.f32 %v647, %v819
  %v1177 = vmax.f32 %v520, %v692
  %v1178 = vmax.f32 %v522, %v694
  %v1179 = vmax.f32 %v563, %v735
  %v1180 = vmax.f32 %v565, %v737
  %v1181 = vmax.f32 %v606, %v778
  %v1182 = vmax.f32 %v608, %v780
  %v1183 = vmax.f32 %v649, %v821
  %v1184 = vmax.f32 %v651, %v823
  %v1185 = vmax.f32 %v860, %v1032
  %v1186 = vmax.f32 %v862, %v1034
  %v1187 = vmax.f32 %v903, %v1075
  %v1188 = vmax.f32 %v905, %v1077
  %v1189 = vmax.f32 %v946, %v1118
  %v1190 = vmax.f32 %v948, %v1120
  %v1191 = vmax.f32 %v989, %v1161
  %v1192 = vmax.f32 %v991, %v1163
  %v1193 = vmax.f32 %v864, %v1036
  %v1194 = vmax.f32 %v866, %v1038
  %v1195 = vmax.f32 %v907, %v1079
  %v1196 = vmax.f32 %v909, %v1081
  %v1197 = vmax.f32 %v950, %v1122
  %v1198 = vmax.f32 %v952, %v1124
  %v1199 = vmax.f32 %v993, %v1165
  %v1200 = vmax.f32 %v995, %v1167
  %v1201 = vmax.f32 %v1169, %v1185
  %v1202 = vmax.f32 %v1170, %v1186
  %v1203 = vmax.f32 %v1171, %v1187
  %v1204 = vmax.f32 %v1172, %v1188
  %v1205 = vmax.f32 %v1173, %v1189
  %v1206 = vmax.f32 %v1174, %v1190
  %v1207 = vmax.f32 %v1175, %v1191
  %v1208 = vmax.f32 %v1176, %v1192
  %v1209 = vmax.f32 %v1177, %v1193
  %v1210 = vmax.f32 %v1178, %v1194
  %v1211 = vmax.f32 %v1179, %v1195
  %v1212 = vmax.f32 %v1180, %v1196
  %v1213 = vmax.f32 %v1181, %v1197
  %v1214 = vmax.f32 %v1182, %v1198
  %v1215 = vmax.f32 %v1183, %v1199
  %v1216 = vmax.f32 %v1184, %v1200
  %v1217 = vld [vmem:[%s2] sm:$0xff]
  %v1218 = vld [vmem:[%s2 + $0x8] sm:$0xff]
  %1220 = vset.pattern.permute.xlu0 0
  %1221 = vperm.xlu0 %1220, %v1217
  %v1222 = vpop.permute.xlu0 %1221
  %1225 = vset.pattern.permute.xlu0 0
  %1226 = vperm.xlu0 %1225, %v1218
  %v1227 = vpop.permute.xlu0 %1226
  %v1229 = vadd.f32 %v1201, %v1222
  %v1230 = vadd.f32 %v1202, %v1222
  %v1231 = vadd.f32 %v1203, %v1222
  %v1232 = vadd.f32 %v1204, %v1222
  %v1233 = vadd.f32 %v1205, %v1222
  %v1234 = vadd.f32 %v1206, %v1222
  %v1235 = vadd.f32 %v1207, %v1222
  %v1236 = vadd.f32 %v1208, %v1222
  %v1237 = vadd.f32 %v1209, %v1227
  %v1238 = vadd.f32 %v1210, %v1227
  %v1239 = vadd.f32 %v1211, %v1227
  %v1240 = vadd.f32 %v1212, %v1227
  %v1241 = vadd.f32 %v1213, %v1227
  %v1242 = vadd.f32 %v1214, %v1227
  %v1243 = vadd.f32 %v1215, %v1227
  %v1244 = vadd.f32 %v1216, %v1227
  %v1245 = vmax.f32 %v1229, 0.0
  %v1246 = vmax.f32 %v1230, 0.0
  %v1247 = vmax.f32 %v1231, 0.0
  %v1248 = vmax.f32 %v1232, 0.0
  %v1249 = vmax.f32 %v1233, 0.0
  %v1250 = vmax.f32 %v1234, 0.0
  %v1251 = vmax.f32 %v1235, 0.0
  %v1252 = vmax.f32 %v1236, 0.0
  %v1253 = vmax.f32 %v1237, 0.0
  %v1254 = vmax.f32 %v1238, 0.0
  %v1255 = vmax.f32 %v1239, 0.0
  %v1256 = vmax.f32 %v1240, 0.0
  %v1257 = vmax.f32 %v1241, 0.0
  %v1258 = vmax.f32 %v1242, 0.0
  %v1259 = vmax.f32 %v1243, 0.0
  %v1260 = vmax.f32 %v1244, 0.0
  %v1261 = vld [vmem:[%s3] sm:$0xff]
  %v1262 = vld [vmem:[%s3 + $0x8] sm:$0xff]
  %v1263 = vld [vmem:[%s3 + $0x10] sm:$0xff]
  %v1264 = vld [vmem:[%s3 + $0x18] sm:$0xff]
  %v1265 = vld [vmem:[%s3 + $0x20] sm:$0xff]
  %v1266 = vld [vmem:[%s3 + $0x28] sm:$0xff]
  %v1267 = vld [vmem:[%s3 + $0x30] sm:$0xff]
  %v1268 = vld [vmem:[%s3 + $0x38] sm:$0xff]
  %v1269 = vunpack.c.l.bf16 %v1261
  %v1270 = vunpack.c.h.bf16 %v1261
  %v1271 = vunpack.c.l.bf16 %v1262
  %v1272 = vunpack.c.h.bf16 %v1262
  %v1273 = vunpack.c.l.bf16 %v1263
  %v1274 = vunpack.c.h.bf16 %v1263
  %v1275 = vunpack.c.l.bf16 %v1264
  %v1276 = vunpack.c.h.bf16 %v1264
  %v1277 = vunpack.c.l.bf16 %v1265
  %v1278 = vunpack.c.h.bf16 %v1265
  %v1279 = vunpack.c.l.bf16 %v1266
  %v1280 = vunpack.c.h.bf16 %v1266
  %v1281 = vunpack.c.l.bf16 %v1267
  %v1282 = vunpack.c.h.bf16 %v1267
  %v1283 = vunpack.c.l.bf16 %v1268
  %v1284 = vunpack.c.h.bf16 %v1268
  %v1285 = vmul.f32 %v1245, %v1269
  %v1286 = vmul.f32 %v1246, %v1270
  %v1287 = vmul.f32 %v1247, %v1271
  %v1288 = vmul.f32 %v1248, %v1272
  %v1289 = vmul.f32 %v1249, %v1273
  %v1290 = vmul.f32 %v1250, %v1274
  %v1291 = vmul.f32 %v1251, %v1275
  %v1292 = vmul.f32 %v1252, %v1276
  %v1293 = vmul.f32 %v1253, %v1277
  %v1294 = vmul.f32 %v1254, %v1278
  %v1295 = vmul.f32 %v1255, %v1279
  %v1296 = vmul.f32 %v1256, %v1280
  %v1297 = vmul.f32 %v1257, %v1281
  %v1298 = vmul.f32 %v1258, %v1282
  %v1299 = vmul.f32 %v1259, %v1283
  %v1300 = vmul.f32 %v1260, %v1284
  %1301 = vst [vmem:[%s4] sm:$0xff] %v1285
  %1302 = vst [vmem:[%s4 + $0x8] sm:$0xff] %v1286
  %1303 = vst [vmem:[%s4 + $0x10] sm:$0xff] %v1287
  %1304 = vst [vmem:[%s4 + $0x18] sm:$0xff] %v1288
  %1305 = vst [vmem:[%s4 + $0x20] sm:$0xff] %v1289
  %1306 = vst [vmem:[%s4 + $0x28] sm:$0xff] %v1290
  %1307 = vst [vmem:[%s4 + $0x30] sm:$0xff] %v1291
  %1308 = vst [vmem:[%s4 + $0x38] sm:$0xff] %v1292
  %1309 = vst [vmem:[%s4 + $0x40] sm:$0xff] %v1293
  %1310 = vst [vmem:[%s4 + $0x48] sm:$0xff] %v1294
  %1311 = vst [vmem:[%s4 + $0x50] sm:$0xff] %v1295
  %1312 = vst [vmem:[%s4 + $0x58] sm:$0xff] %v1296
  %1313 = vst [vmem:[%s4 + $0x60] sm:$0xff] %v1297
  %1314 = vst [vmem:[%s4 + $0x68] sm:$0xff] %v1298
  %1315 = vst [vmem:[%s4 + $0x70] sm:$0xff] %v1299
  %1316 = vst [vmem:[%s4 + $0x78] sm:$0xff] %v1300
  // Predicated region
  $region18: #{my_cnn_forward.4} parent=0 // pred_check
    _
  $region19: #{my_cnn_forward.4} parent=0 // pred_check_branch
    %1318 = sbr.rel (0) target = $region21
  $region20: #{my_cnn_forward.4} parent=0 // pred_region
    _
  $region21: #{my_cnn_forward.4} parent=0 // pred_fallthru
    _
  // Predicated region
  $region22: #{my_cnn_forward.4} parent=0 // pred_check
    _
  $region23: #{my_cnn_forward.4} parent=0 // pred_check_branch
    %1320 = sbr.rel (0) target = $region25
  $region24: #{my_cnn_forward.4} parent=0 // pred_region
    _
  $region25: #{my_cnn_forward.4} parent=0 // pred_fallthru
    _

// kernel: my_cnn_forward.5
$region0: #{my_cnn_forward.5}
  #allocation0 [shape = 'u32[]', space=smem, size = 0x4, offset = 0x4, fixed_abs, tag = 'smem constant byte address 0x4 - core index']
  #allocation1 [shape = 'u32[144,128]{1,0:T(1,128)}', space=vmem, size = 0x12000, scoped, tag = 'internal scratch']
  %s0 = inlined_call_operand.vmem [shape: bf16[144,1024], index: 0, kind: input, shape index: {}]
  %s1 = inlined_call_operand.vmem [shape: bf16[32,144], index: 1, kind: input, shape index: {}]
  %s2 = inlined_call_operand.vmem [shape: f32[32,1], index: 2, kind: input, shape index: {}]
  %s3 = inlined_call_operand.vmem [shape: bf16[32,256], index: 3, kind: input, shape index: {}]
  %s4 = inlined_call_operand.vmem [shape: f32[32,256], index: 4, kind: output, shape index: {}]
  %s5 = sld [smem:[#allocation0]]
  $region26: #{my_cnn_forward.5} parent=0
    _
  %s7 = ssub.s32 1, %s5
  %s8 = scalar_select 0, %s7, %s5
  // Predicated region
  $region2: #{my_cnn_forward.5} parent=0 // pred_check
    _
  $region3: #{my_cnn_forward.5} parent=0 // pred_check_branch
    %10 = sbr.rel (0) target = $region5
  $region4: #{my_cnn_forward.5} parent=0 // pred_region
    _
  $region5: #{my_cnn_forward.5} parent=0 // pred_fallthru
    _
  // Predicated region
  $region6: #{my_cnn_forward.5} parent=0 // pred_check
    _
  $region7: #{my_cnn_forward.5} parent=0 // pred_check_branch
    %12 = sbr.rel (0) target = $region9
  $region8: #{my_cnn_forward.5} parent=0 // pred_region
    _
  $region9: #{my_cnn_forward.5} parent=0 // pred_fallthru
    _
  // Predicated region
  $region10: #{my_cnn_forward.5} parent=0 // pred_check
    _
  $region11: #{my_cnn_forward.5} parent=0 // pred_check_branch
    %14 = sbr.rel (0) target = $region13
  $region12: #{my_cnn_forward.5} parent=0 // pred_region
    _
  $region13: #{my_cnn_forward.5} parent=0 // pred_fallthru
    _
  // Predicated region
  $region14: #{my_cnn_forward.5} parent=0 // pred_check
    _
  $region15: #{my_cnn_forward.5} parent=0 // pred_check_branch
    %16 = sbr.rel (0) target = $region17
  $region16: #{my_cnn_forward.5} parent=0 // pred_region
    _
  $region17: #{my_cnn_forward.5} parent=0 // pred_fallthru
    _
  %v18 = vld [vmem:[%s1] sm:$0xff]
  %v19 = vld [vmem:[%s1 + $0x8] sm:$0xff]
  %v20 = vld [vmem:[%s1 + $0x10] sm:$0xff]
  %v21 = vld [vmem:[%s1 + $0x18] sm:$0xff]
  %v22 = vld [vmem:[%s0] sm:$0xff]
  %v23 = vld [vmem:[%s0 + $0x8] sm:$0xff]
  %v24 = vld [vmem:[%s0 + $0x10] sm:$0xff]
  %v25 = vld [vmem:[%s0 + $0x18] sm:$0xff]
  %v26 = vld [vmem:[%s0 + $0x20] sm:$0xff]
  %v27 = vld [vmem:[%s0 + $0x28] sm:$0xff]
  %v28 = vld [vmem:[%s0 + $0x30] sm:$0xff]
  %v29 = vld [vmem:[%s0 + $0x38] sm:$0xff]
  %v30 = vld [vmem:[%s0 + $0x40] sm:$0xff]
  %v31 = vld [vmem:[%s0 + $0x48] sm:$0xff]
  %v32 = vld [vmem:[%s0 + $0x50] sm:$0xff]
  %v33 = vld [vmem:[%s0 + $0x58] sm:$0xff]
  %v34 = vld [vmem:[%s0 + $0x60] sm:$0xff]
  %v35 = vld [vmem:[%s0 + $0x68] sm:$0xff]
  %v36 = vld [vmem:[%s0 + $0x70] sm:$0xff]
  %v37 = vld [vmem:[%s0 + $0x78] sm:$0xff]
  %v38 = vld [vmem:[%s0 + $0x80] sm:$0xff]
  %v39 = vld [vmem:[%s0 + $0x88] sm:$0xff]
  %v40 = vld [vmem:[%s0 + $0x90] sm:$0xff]
  %v41 = vld [vmem:[%s0 + $0x98] sm:$0xff]
  %v42 = vld [vmem:[%s0 + $0xa0] sm:$0xff]
  %v43 = vld [vmem:[%s0 + $0xa8] sm:$0xff]
  %v44 = vld [vmem:[%s0 + $0xb0] sm:$0xff]
  %v45 = vld [vmem:[%s0 + $0xb8] sm:$0xff]
  %v46 = vld [vmem:[%s0 + $0xc0] sm:$0xff]
  %v47 = vld [vmem:[%s0 + $0xc8] sm:$0xff]
  %v48 = vld [vmem:[%s0 + $0xd0] sm:$0xff]
  %v49 = vld [vmem:[%s0 + $0xd8] sm:$0xff]
  %v50 = vld [vmem:[%s0 + $0xe0] sm:$0xff]
  %v51 = vld [vmem:[%s0 + $0xe8] sm:$0xff]
  %v52 = vld [vmem:[%s0 + $0xf0] sm:$0xff]
  %v53 = vld [vmem:[%s0 + $0xf8] sm:$0xff]
  %v54 = vld [vmem:[%s0 + $0x100] sm:$0xff]
  %v55 = vld [vmem:[%s0 + $0x108] sm:$0xff]
  %v56 = vld [vmem:[%s0 + $0x110] sm:$0xff]
  %v57 = vld [vmem:[%s0 + $0x118] sm:$0xff]
  %v58 = vld [vmem:[%s0 + $0x120] sm:$0xff]
  %v59 = vld [vmem:[%s0 + $0x128] sm:$0xff]
  %v60 = vld [vmem:[%s0 + $0x130] sm:$0xff]
  %v61 = vld [vmem:[%s0 + $0x138] sm:$0xff]
  %v62 = vld [vmem:[%s0 + $0x140] sm:$0xff]
  %v63 = vld [vmem:[%s0 + $0x148] sm:$0xff]
  %v64 = vld [vmem:[%s0 + $0x150] sm:$0xff]
  %v65 = vld [vmem:[%s0 + $0x158] sm:$0xff]
  %v66 = vld [vmem:[%s0 + $0x160] sm:$0xff]
  %v67 = vld [vmem:[%s0 + $0x168] sm:$0xff]
  %v68 = vld [vmem:[%s0 + $0x170] sm:$0xff]
  %v69 = vld [vmem:[%s0 + $0x178] sm:$0xff]
  %v70 = vld [vmem:[%s0 + $0x180] sm:$0xff]
  %v71 = vld [vmem:[%s0 + $0x188] sm:$0xff]
  %v72 = vld [vmem:[%s0 + $0x190] sm:$0xff]
  %v73 = vld [vmem:[%s0 + $0x198] sm:$0xff]
  %v74 = vld [vmem:[%s0 + $0x1a0] sm:$0xff]
  %v75 = vld [vmem:[%s0 + $0x1a8] sm:$0xff]
  %v76 = vld [vmem:[%s0 + $0x1b0] sm:$0xff]
  %v77 = vld [vmem:[%s0 + $0x1b8] sm:$0xff]
  %v78 = vld [vmem:[%s0 + $0x1c0] sm:$0xff]
  %v79 = vld [vmem:[%s0 + $0x1c8] sm:$0xff]
  %v80 = vld [vmem:[%s0 + $0x1d0] sm:$0xff]
  %v81 = vld [vmem:[%s0 + $0x1d8] sm:$0xff]
  %v82 = vld [vmem:[%s0 + $0x1e0] sm:$0xff]
  %v83 = vld [vmem:[%s0 + $0x1e8] sm:$0xff]
  %v84 = vld [vmem:[%s0 + $0x1f0] sm:$0xff]
  %v85 = vld [vmem:[%s0 + $0x1f8] sm:$0xff]
  %v86 = vld [vmem:[%s0 + $0x200] sm:$0xff]
  %v87 = vld [vmem:[%s0 + $0x208] sm:$0xff]
  %v88 = vld [vmem:[%s0 + $0x210] sm:$0xff]
  %v89 = vld [vmem:[%s0 + $0x218] sm:$0xff]
  %v90 = vld [vmem:[%s0 + $0x220] sm:$0xff]
  %v91 = vld [vmem:[%s0 + $0x228] sm:$0xff]
  %v92 = vld [vmem:[%s0 + $0x230] sm:$0xff]
  %v93 = vld [vmem:[%s0 + $0x238] sm:$0xff]
  %v98 = vunpack.c.l.b16 %v18
  %v99 = vunpack.c.h.b16 %v18
  %v100 = vunpack.c.l.b16 %v19
  %v101 = vunpack.c.h.b16 %v19
  %v102 = vunpack.c.l.b16 %v20
  %v103 = vunpack.c.h.b16 %v20
  %v104 = vunpack.c.l.b16 %v21
  %v105 = vunpack.c.h.b16 %v21
  %v106 = vpack.c.b16 %v100, %v98
  %v107 = vpack.c.b16 %v101, %v99
  %v108 = vpack.c.b16 %v104, %v102
  %v109 = vpack.c.b16 %v105, %v103
  %v184 = vunpack.c.l.b16 %v22
  %v185 = vunpack.c.h.b16 %v22
  %v186 = vunpack.c.l.b16 %v23
  %v187 = vunpack.c.h.b16 %v23
  %v188 = vunpack.c.l.b16 %v24
  %v189 = vunpack.c.h.b16 %v24
  %v190 = vunpack.c.l.b16 %v25
  %v191 = vunpack.c.h.b16 %v25
  %v192 = vunpack.c.l.b16 %v26
  %v193 = vunpack.c.h.b16 %v26
  %v194 = vunpack.c.l.b16 %v27
  %v195 = vunpack.c.h.b16 %v27
  %v196 = vunpack.c.l.b16 %v28
  %v197 = vunpack.c.h.b16 %v28
  %v198 = vunpack.c.l.b16 %v29
  %v199 = vunpack.c.h.b16 %v29
  %v200 = vunpack.c.l.b16 %v30
  %v201 = vunpack.c.h.b16 %v30
  %v202 = vunpack.c.l.b16 %v31
  %v203 = vunpack.c.h.b16 %v31
  %v204 = vunpack.c.l.b16 %v32
  %v205 = vunpack.c.h.b16 %v32
  %v206 = vunpack.c.l.b16 %v33
  %v207 = vunpack.c.h.b16 %v33
  %v208 = vunpack.c.l.b16 %v34
  %v209 = vunpack.c.h.b16 %v34
  %v210 = vunpack.c.l.b16 %v35
  %v211 = vunpack.c.h.b16 %v35
  %v212 = vunpack.c.l.b16 %v36
  %v213 = vunpack.c.h.b16 %v36
  %v214 = vunpack.c.l.b16 %v37
  %v215 = vunpack.c.h.b16 %v37
  %v216 = vunpack.c.l.b16 %v38
  %v217 = vunpack.c.h.b16 %v38
  %v218 = vunpack.c.l.b16 %v39
  %v219 = vunpack.c.h.b16 %v39
  %v220 = vunpack.c.l.b16 %v40
  %v221 = vunpack.c.h.b16 %v40
  %v222 = vunpack.c.l.b16 %v41
  %v223 = vunpack.c.h.b16 %v41
  %v224 = vunpack.c.l.b16 %v42
  %v225 = vunpack.c.h.b16 %v42
  %v226 = vunpack.c.l.b16 %v43
  %v227 = vunpack.c.h.b16 %v43
  %v228 = vunpack.c.l.b16 %v44
  %v229 = vunpack.c.h.b16 %v44
  %v230 = vunpack.c.l.b16 %v45
  %v231 = vunpack.c.h.b16 %v45
  %v232 = vunpack.c.l.b16 %v46
  %v233 = vunpack.c.h.b16 %v46
  %v234 = vunpack.c.l.b16 %v47
  %v235 = vunpack.c.h.b16 %v47
  %v236 = vunpack.c.l.b16 %v48
  %v237 = vunpack.c.h.b16 %v48
  %v238 = vunpack.c.l.b16 %v49
  %v239 = vunpack.c.h.b16 %v49
  %v240 = vunpack.c.l.b16 %v50
  %v241 = vunpack.c.h.b16 %v50
  %v242 = vunpack.c.l.b16 %v51
  %v243 = vunpack.c.h.b16 %v51
  %v244 = vunpack.c.l.b16 %v52
  %v245 = vunpack.c.h.b16 %v52
  %v246 = vunpack.c.l.b16 %v53
  %v247 = vunpack.c.h.b16 %v53
  %v248 = vunpack.c.l.b16 %v54
  %v249 = vunpack.c.h.b16 %v54
  %v250 = vunpack.c.l.b16 %v55
  %v251 = vunpack.c.h.b16 %v55
  %v252 = vunpack.c.l.b16 %v56
  %v253 = vunpack.c.h.b16 %v56
  %v254 = vunpack.c.l.b16 %v57
  %v255 = vunpack.c.h.b16 %v57
  %v256 = vunpack.c.l.b16 %v58
  %v257 = vunpack.c.h.b16 %v58
  %v258 = vunpack.c.l.b16 %v59
  %v259 = vunpack.c.h.b16 %v59
  %v260 = vunpack.c.l.b16 %v60
  %v261 = vunpack.c.h.b16 %v60
  %v262 = vunpack.c.l.b16 %v61
  %v263 = vunpack.c.h.b16 %v61
  %v264 = vunpack.c.l.b16 %v62
  %v265 = vunpack.c.h.b16 %v62
  %v266 = vunpack.c.l.b16 %v63
  %v267 = vunpack.c.h.b16 %v63
  %v268 = vunpack.c.l.b16 %v64
  %v269 = vunpack.c.h.b16 %v64
  %v270 = vunpack.c.l.b16 %v65
  %v271 = vunpack.c.h.b16 %v65
  %v272 = vunpack.c.l.b16 %v66
  %v273 = vunpack.c.h.b16 %v66
  %v274 = vunpack.c.l.b16 %v67
  %v275 = vunpack.c.h.b16 %v67
  %v276 = vunpack.c.l.b16 %v68
  %v277 = vunpack.c.h.b16 %v68
  %v278 = vunpack.c.l.b16 %v69
  %v279 = vunpack.c.h.b16 %v69
  %v280 = vunpack.c.l.b16 %v70
  %v281 = vunpack.c.h.b16 %v70
  %v282 = vunpack.c.l.b16 %v71
  %v283 = vunpack.c.h.b16 %v71
  %v284 = vunpack.c.l.b16 %v72
  %v285 = vunpack.c.h.b16 %v72
  %v286 = vunpack.c.l.b16 %v73
  %v287 = vunpack.c.h.b16 %v73
  %v288 = vunpack.c.l.b16 %v74
  %v289 = vunpack.c.h.b16 %v74
  %v290 = vunpack.c.l.b16 %v75
  %v291 = vunpack.c.h.b16 %v75
  %v292 = vunpack.c.l.b16 %v76
  %v293 = vunpack.c.h.b16 %v76
  %v294 = vunpack.c.l.b16 %v77
  %v295 = vunpack.c.h.b16 %v77
  %v296 = vunpack.c.l.b16 %v78
  %v297 = vunpack.c.h.b16 %v78
  %v298 = vunpack.c.l.b16 %v79
  %v299 = vunpack.c.h.b16 %v79
  %v300 = vunpack.c.l.b16 %v80
  %v301 = vunpack.c.h.b16 %v80
  %v302 = vunpack.c.l.b16 %v81
  %v303 = vunpack.c.h.b16 %v81
  %v304 = vunpack.c.l.b16 %v82
  %v305 = vunpack.c.h.b16 %v82
  %v306 = vunpack.c.l.b16 %v83
  %v307 = vunpack.c.h.b16 %v83
  %v308 = vunpack.c.l.b16 %v84
  %v309 = vunpack.c.h.b16 %v84
  %v310 = vunpack.c.l.b16 %v85
  %v311 = vunpack.c.h.b16 %v85
  %v312 = vunpack.c.l.b16 %v86
  %v313 = vunpack.c.h.b16 %v86
  %v314 = vunpack.c.l.b16 %v87
  %v315 = vunpack.c.h.b16 %v87
  %v316 = vunpack.c.l.b16 %v88
  %v317 = vunpack.c.h.b16 %v88
  %v318 = vunpack.c.l.b16 %v89
  %v319 = vunpack.c.h.b16 %v89
  %v320 = vunpack.c.l.b16 %v90
  %v321 = vunpack.c.h.b16 %v90
  %v322 = vunpack.c.l.b16 %v91
  %v323 = vunpack.c.h.b16 %v91
  %v324 = vunpack.c.l.b16 %v92
  %v325 = vunpack.c.h.b16 %v92
  %v326 = vunpack.c.l.b16 %v93
  %v327 = vunpack.c.h.b16 %v93
  %v328 = vpack.c.b16 %v192, %v184
  %v329 = vpack.c.b16 %v193, %v185
  %v330 = vpack.c.b16 %v194, %v186
  %v331 = vpack.c.b16 %v195, %v187
  %v332 = vpack.c.b16 %v196, %v188
  %v333 = vpack.c.b16 %v197, %v189
  %v334 = vpack.c.b16 %v198, %v190
  %v335 = vpack.c.b16 %v199, %v191
  %v336 = vpack.c.b16 %v208, %v200
  %v337 = vpack.c.b16 %v209, %v201
  %v338 = vpack.c.b16 %v210, %v202
  %v339 = vpack.c.b16 %v211, %v203
  %v340 = vpack.c.b16 %v212, %v204
  %v341 = vpack.c.b16 %v213, %v205
  %v342 = vpack.c.b16 %v214, %v206
  %v343 = vpack.c.b16 %v215, %v207
  %v344 = vpack.c.b16 %v224, %v216
  %v345 = vpack.c.b16 %v225, %v217
  %v346 = vpack.c.b16 %v226, %v218
  %v347 = vpack.c.b16 %v227, %v219
  %v348 = vpack.c.b16 %v228, %v220
  %v349 = vpack.c.b16 %v229, %v221
  %v350 = vpack.c.b16 %v230, %v222
  %v351 = vpack.c.b16 %v231, %v223
  %v352 = vpack.c.b16 %v240, %v232
  %v353 = vpack.c.b16 %v241, %v233
  %v354 = vpack.c.b16 %v242, %v234
  %v355 = vpack.c.b16 %v243, %v235
  %v356 = vpack.c.b16 %v244, %v236
  %v357 = vpack.c.b16 %v245, %v237
  %v358 = vpack.c.b16 %v246, %v238
  %v359 = vpack.c.b16 %v247, %v239
  %v360 = vpack.c.b16 %v256, %v248
  %v361 = vpack.c.b16 %v257, %v249
  %v362 = vpack.c.b16 %v258, %v250
  %v363 = vpack.c.b16 %v259, %v251
  %v364 = vpack.c.b16 %v260, %v252
  %v365 = vpack.c.b16 %v261, %v253
  %v366 = vpack.c.b16 %v262, %v254
  %v367 = vpack.c.b16 %v263, %v255
  %v368 = vpack.c.b16 %v272, %v264
  %v369 = vpack.c.b16 %v273, %v265
  %v370 = vpack.c.b16 %v274, %v266
  %v371 = vpack.c.b16 %v275, %v267
  %v372 = vpack.c.b16 %v276, %v268
  %v373 = vpack.c.b16 %v277, %v269
  %v374 = vpack.c.b16 %v278, %v270
  %v375 = vpack.c.b16 %v279, %v271
  %v376 = vpack.c.b16 %v288, %v280
  %v377 = vpack.c.b16 %v289, %v281
  %v378 = vpack.c.b16 %v290, %v282
  %v379 = vpack.c.b16 %v291, %v283
  %v380 = vpack.c.b16 %v292, %v284
  %v381 = vpack.c.b16 %v293, %v285
  %v382 = vpack.c.b16 %v294, %v286
  %v383 = vpack.c.b16 %v295, %v287
  %v384 = vpack.c.b16 %v304, %v296
  %v385 = vpack.c.b16 %v305, %v297
  %v386 = vpack.c.b16 %v306, %v298
  %v387 = vpack.c.b16 %v307, %v299
  %v388 = vpack.c.b16 %v308, %v300
  %v389 = vpack.c.b16 %v309, %v301
  %v390 = vpack.c.b16 %v310, %v302
  %v391 = vpack.c.b16 %v311, %v303
  %v392 = vpack.c.b16 %v320, %v312
  %v393 = vpack.c.b16 %v321, %v313
  %v394 = vpack.c.b16 %v322, %v314
  %v395 = vpack.c.b16 %v323, %v315
  %v396 = vpack.c.b16 %v324, %v316
  %v397 = vpack.c.b16 %v325, %v317
  %v398 = vpack.c.b16 %v326, %v318
  %v399 = vpack.c.b16 %v327, %v319
  %vm472 = vcmask 130048
  %v474 = vsel %vm472, %v107, 0
  %v477 = vsel %vm472, %v109, 0
  %479 = vmatprep.subr.bf16.mxu0 %v329
  %480 = vmatpush1.bf16.msra.mxu0 %v328
  %481 = vmatprep.subr.bf16.mxu0 %v337
  %482 = vmatpush1.bf16.msra.mxu0 %v336
  %483 = vmatprep.subr.bf16.mxu0 %v345
  %484 = vmatpush1.bf16.msra.mxu0 %v344
  %485 = vmatprep.subr.bf16.mxu0 %v353
  %486 = vmatpush1.bf16.msra.mxu0 %v352
  %487 = vmatprep.subr.bf16.mxu0 %v361
  %488 = vmatpush1.bf16.msra.mxu0 %v360
  %489 = vmatprep.subr.bf16.mxu0 %v369
  %490 = vmatpush1.bf16.msra.mxu0 %v368
  %491 = vmatprep.subr.bf16.mxu0 %v377
  %492 = vmatpush1.bf16.msra.mxu0 %v376
  %493 = vmatprep.subr.bf16.mxu0 %v385
  %494 = vmatpush1.bf16.msra.mxu0 %v384
  %495 = vmatprep.subr.bf16.mxu0 %v393
  %496 = vmatpush1.bf16.msra.mxu0 %v392
  %497 = vmatprep.subr.bf16.mxu0 0
  %498 = vmatpush1.bf16.msra.mxu0 0
  %499 = vmatprep.subr.bf16.mxu0 0
  %500 = vmatpush1.bf16.msra.mxu0 0
  %501 = vmatprep.subr.bf16.mxu0 0
  %502 = vmatpush1.bf16.msra.mxu0 0
  %503 = vmatprep.subr.bf16.mxu0 0
  %504 = vmatpush1.bf16.msra.mxu0 0
  %505 = vmatprep.subr.bf16.mxu0 0
  %506 = vmatpush1.bf16.msra.mxu0 0
  %507 = vmatprep.subr.bf16.mxu0 0
  %508 = vmatpush1.bf16.msra.mxu0 0
  %509 = vmatprep.subr.bf16.mxu0 0
  %510 = vmatpush1.bf16.msra.mxu0 0
  %511 = vmatprep.mubr.bf16.mxu0 %v474
  %512 = vmatmul.mubr.bf16.gmra.mrb[0].mxu0 %v106
  %v513 = vpop.f32.mrb[0].mxu0
  %v514 = vadd.f32 0.0, %v513
  %v515 = vpop.f32.mrb[0].mxu0
  %v516 = vadd.f32 0.0, %v515
  %v517 = vpop.f32.mrb[0].mxu0
  %v518 = vadd.f32 0.0, %v517
  %v519 = vpop.f32.mrb[0].mxu0
  %v520 = vadd.f32 0.0, %v519
  %521 = vmatprep.mubr.bf16.mxu0 %v477
  %522 = vmatmul.mubr.bf16.gmra.mrb[0].mxu0 %v108
  %v523 = vpop.f32.mrb[0].mxu0
  %v524 = vadd.f32 0.0, %v523
  %v525 = vpop.f32.mrb[0].mxu0
  %v526 = vadd.f32 0.0, %v525
  %v527 = vpop.f32.mrb[0].mxu0
  %v528 = vadd.f32 0.0, %v527
  %v529 = vpop.f32.mrb[0].mxu0
  %v530 = vadd.f32 0.0, %v529
  %531 = vdwg.mxu0
  %532 = vmatprep.subr.bf16.mxu0 %v331
  %533 = vmatpush1.bf16.msra.mxu0 %v330
  %534 = vmatprep.subr.bf16.mxu0 %v339
  %535 = vmatpush1.bf16.msra.mxu0 %v338
  %536 = vmatprep.subr.bf16.mxu0 %v347
  %537 = vmatpush1.bf16.msra.mxu0 %v346
  %538 = vmatprep.subr.bf16.mxu0 %v355
  %539 = vmatpush1.bf16.msra.mxu0 %v354
  %540 = vmatprep.subr.bf16.mxu0 %v363
  %541 = vmatpush1.bf16.msra.mxu0 %v362
  %542 = vmatprep.subr.bf16.mxu0 %v371
  %543 = vmatpush1.bf16.msra.mxu0 %v370
  %544 = vmatprep.subr.bf16.mxu0 %v379
  %545 = vmatpush1.bf16.msra.mxu0 %v378
  %546 = vmatprep.subr.bf16.mxu0 %v387
  %547 = vmatpush1.bf16.msra.mxu0 %v386
  %548 = vmatprep.subr.bf16.mxu0 %v395
  %549 = vmatpush1.bf16.msra.mxu0 %v394
  %550 = vmatprep.subr.bf16.mxu0 0
  %551 = vmatpush1.bf16.msra.mxu0 0
  %552 = vmatprep.subr.bf16.mxu0 0
  %553 = vmatpush1.bf16.msra.mxu0 0
  %554 = vmatprep.subr.bf16.mxu0 0
  %555 = vmatpush1.bf16.msra.mxu0 0
  %556 = vmatprep.subr.bf16.mxu0 0
  %557 = vmatpush1.bf16.msra.mxu0 0
  %558 = vmatprep.subr.bf16.mxu0 0
  %559 = vmatpush1.bf16.msra.mxu0 0
  %560 = vmatprep.subr.bf16.mxu0 0
  %561 = vmatpush1.bf16.msra.mxu0 0
  %562 = vmatprep.subr.bf16.mxu0 0
  %563 = vmatpush1.bf16.msra.mxu0 0
  %564 = vmatprep.mubr.bf16.mxu0 %v474
  %565 = vmatmul.mubr.bf16.gmra.mrb[0].mxu0 %v106
  %v566 = vpop.f32.mrb[0].mxu0
  %v567 = vadd.f32 0.0, %v566
  %v568 = vpop.f32.mrb[0].mxu0
  %v569 = vadd.f32 0.0, %v568
  %v570 = vpop.f32.mrb[0].mxu0
  %v571 = vadd.f32 0.0, %v570
  %v572 = vpop.f32.mrb[0].mxu0
  %v573 = vadd.f32 0.0, %v572
  %574 = vmatprep.mubr.bf16.mxu0 %v477
  %575 = vmatmul.mubr.bf16.gmra.mrb[0].mxu0 %v108
  %v576 = vpop.f32.mrb[0].mxu0
  %v577 = vadd.f32 0.0, %v576
  %v578 = vpop.f32.mrb[0].mxu0
  %v579 = vadd.f32 0.0, %v578
  %v580 = vpop.f32.mrb[0].mxu0
  %v581 = vadd.f32 0.0, %v580
  %v582 = vpop.f32.mrb[0].mxu0
  %v583 = vadd.f32 0.0, %v582
  %584 = vdwg.mxu0
  %585 = vmatprep.subr.bf16.mxu0 %v333
  %586 = vmatpush1.bf16.msra.mxu0 %v332
  %587 = vmatprep.subr.bf16.mxu0 %v341
  %588 = vmatpush1.bf16.msra.mxu0 %v340
  %589 = vmatprep.subr.bf16.mxu0 %v349
  %590 = vmatpush1.bf16.msra.mxu0 %v348
  %591 = vmatprep.subr.bf16.mxu0 %v357
  %592 = vmatpush1.bf16.msra.mxu0 %v356
  %593 = vmatprep.subr.bf16.mxu0 %v365
  %594 = vmatpush1.bf16.msra.mxu0 %v364
  %595 = vmatprep.subr.bf16.mxu0 %v373
  %596 = vmatpush1.bf16.msra.mxu0 %v372
  %597 = vmatprep.subr.bf16.mxu0 %v381
  %598 = vmatpush1.bf16.msra.mxu0 %v380
  %599 = vmatprep.subr.bf16.mxu0 %v389
  %600 = vmatpush1.bf16.msra.mxu0 %v388
  %601 = vmatprep.subr.bf16.mxu0 %v397
  %602 = vmatpush1.bf16.msra.mxu0 %v396
  %603 = vmatprep.subr.bf16.mxu0 0
  %604 = vmatpush1.bf16.msra.mxu0 0
  %605 = vmatprep.subr.bf16.mxu0 0
  %606 = vmatpush1.bf16.msra.mxu0 0
  %607 = vmatprep.subr.bf16.mxu0 0
  %608 = vmatpush1.bf16.msra.mxu0 0
  %609 = vmatprep.subr.bf16.mxu0 0
  %610 = vmatpush1.bf16.msra.mxu0 0
  %611 = vmatprep.subr.bf16.mxu0 0
  %612 = vmatpush1.bf16.msra.mxu0 0
  %613 = vmatprep.subr.bf16.mxu0 0
  %614 = vmatpush1.bf16.msra.mxu0 0
  %615 = vmatprep.subr.bf16.mxu0 0
  %616 = vmatpush1.bf16.msra.mxu0 0
  %617 = vmatprep.mubr.bf16.mxu0 %v474
  %618 = vmatmul.mubr.bf16.gmra.mrb[0].mxu0 %v106
  %v619 = vpop.f32.mrb[0].mxu0
  %v620 = vadd.f32 0.0, %v619
  %v621 = vpop.f32.mrb[0].mxu0
  %v622 = vadd.f32 0.0, %v621
  %v623 = vpop.f32.mrb[0].mxu0
  %v624 = vadd.f32 0.0, %v623
  %v625 = vpop.f32.mrb[0].mxu0
  %v626 = vadd.f32 0.0, %v625
  %627 = vmatprep.mubr.bf16.mxu0 %v477
  %628 = vmatmul.mubr.bf16.gmra.mrb[0].mxu0 %v108
  %v629 = vpop.f32.mrb[0].mxu0
  %v630 = vadd.f32 0.0, %v629
  %v631 = vpop.f32.mrb[0].mxu0
  %v632 = vadd.f32 0.0, %v631
  %v633 = vpop.f32.mrb[0].mxu0
  %v634 = vadd.f32 0.0, %v633
  %v635 = vpop.f32.mrb[0].mxu0
  %v636 = vadd.f32 0.0, %v635
  %637 = vdwg.mxu0
  %638 = vmatprep.subr.bf16.mxu0 %v335
  %639 = vmatpush1.bf16.msra.mxu0 %v334
  %640 = vmatprep.subr.bf16.mxu0 %v343
  %641 = vmatpush1.bf16.msra.mxu0 %v342
  %642 = vmatprep.subr.bf16.mxu0 %v351
  %643 = vmatpush1.bf16.msra.mxu0 %v350
  %644 = vmatprep.subr.bf16.mxu0 %v359
  %645 = vmatpush1.bf16.msra.mxu0 %v358
  %646 = vmatprep.subr.bf16.mxu0 %v367
  %647 = vmatpush1.bf16.msra.mxu0 %v366
  %648 = vmatprep.subr.bf16.mxu0 %v375
  %649 = vmatpush1.bf16.msra.mxu0 %v374
  %650 = vmatprep.subr.bf16.mxu0 %v383
  %651 = vmatpush1.bf16.msra.mxu0 %v382
  %652 = vmatprep.subr.bf16.mxu0 %v391
  %653 = vmatpush1.bf16.msra.mxu0 %v390
  %654 = vmatprep.subr.bf16.mxu0 %v399
  %655 = vmatpush1.bf16.msra.mxu0 %v398
  %656 = vmatprep.subr.bf16.mxu0 0
  %657 = vmatpush1.bf16.msra.mxu0 0
  %658 = vmatprep.subr.bf16.mxu0 0
  %659 = vmatpush1.bf16.msra.mxu0 0
  %660 = vmatprep.subr.bf16.mxu0 0
  %661 = vmatpush1.bf16.msra.mxu0 0
  %662 = vmatprep.subr.bf16.mxu0 0
  %663 = vmatpush1.bf16.msra.mxu0 0
  %664 = vmatprep.subr.bf16.mxu0 0
  %665 = vmatpush1.bf16.msra.mxu0 0
  %666 = vmatprep.subr.bf16.mxu0 0
  %667 = vmatpush1.bf16.msra.mxu0 0
  %668 = vmatprep.subr.bf16.mxu0 0
  %669 = vmatpush1.bf16.msra.mxu0 0
  %670 = vmatprep.mubr.bf16.mxu0 %v474
  %671 = vmatmul.mubr.bf16.gmra.mrb[0].mxu0 %v106
  %v672 = vpop.f32.mrb[0].mxu0
  %v673 = vadd.f32 0.0, %v672
  %v674 = vpop.f32.mrb[0].mxu0
  %v675 = vadd.f32 0.0, %v674
  %v676 = vpop.f32.mrb[0].mxu0
  %v677 = vadd.f32 0.0, %v676
  %v678 = vpop.f32.mrb[0].mxu0
  %v679 = vadd.f32 0.0, %v678
  %680 = vmatprep.mubr.bf16.mxu0 %v477
  %681 = vmatmul.mubr.bf16.gmra.mrb[0].mxu0 %v108
  %v682 = vpop.f32.mrb[0].mxu0
  %v683 = vadd.f32 0.0, %v682
  %v684 = vpop.f32.mrb[0].mxu0
  %v685 = vadd.f32 0.0, %v684
  %v686 = vpop.f32.mrb[0].mxu0
  %v687 = vadd.f32 0.0, %v686
  %v688 = vpop.f32.mrb[0].mxu0
  %v689 = vadd.f32 0.0, %v688
  %690 = vdwg.mxu0
  %v691 = vmax.f32 %v514, %v567
  %v692 = vmax.f32 %v516, %v569
  %v693 = vmax.f32 %v518, %v571
  %v694 = vmax.f32 %v520, %v573
  %v695 = vmax.f32 %v524, %v577
  %v696 = vmax.f32 %v526, %v579
  %v697 = vmax.f32 %v528, %v581
  %v698 = vmax.f32 %v530, %v583
  %v699 = vmax.f32 %v620, %v673
  %v700 = vmax.f32 %v622, %v675
  %v701 = vmax.f32 %v624, %v677
  %v702 = vmax.f32 %v626, %v679
  %v703 = vmax.f32 %v630, %v683
  %v704 = vmax.f32 %v632, %v685
  %v705 = vmax.f32 %v634, %v687
  %v706 = vmax.f32 %v636, %v689
  %v707 = vmax.f32 %v691, %v699
  %v708 = vmax.f32 %v692, %v700
  %v709 = vmax.f32 %v693, %v701
  %v710 = vmax.f32 %v694, %v702
  %v711 = vmax.f32 %v695, %v703
  %v712 = vmax.f32 %v696, %v704
  %v713 = vmax.f32 %v697, %v705
  %v714 = vmax.f32 %v698, %v706
  %v715 = vld [vmem:[%s2] sm:$0xff]
  %v716 = vld [vmem:[%s2 + $0x8] sm:$0xff]
  %v717 = vld [vmem:[%s2 + $0x10] sm:$0xff]
  %v718 = vld [vmem:[%s2 + $0x18] sm:$0xff]
  %720 = vset.pattern.permute.xlu0 0
  %721 = vperm.xlu0 %720, %v715
  %v722 = vpop.permute.xlu0 %721
  %725 = vset.pattern.permute.xlu0 0
  %726 = vperm.xlu0 %725, %v716
  %v727 = vpop.permute.xlu0 %726
  %730 = vset.pattern.permute.xlu0 0
  %731 = vperm.xlu0 %730, %v717
  %v732 = vpop.permute.xlu0 %731
  %735 = vset.pattern.permute.xlu0 0
  %736 = vperm.xlu0 %735, %v718
  %v737 = vpop.permute.xlu0 %736
  %v739 = vadd.f32 %v707, %v722
  %v740 = vadd.f32 %v708, %v722
  %v741 = vadd.f32 %v709, %v727
  %v742 = vadd.f32 %v710, %v727
  %v743 = vadd.f32 %v711, %v732
  %v744 = vadd.f32 %v712, %v732
  %v745 = vadd.f32 %v713, %v737
  %v746 = vadd.f32 %v714, %v737
  %v747 = vmax.f32 %v739, 0.0
  %v748 = vmax.f32 %v740, 0.0
  %v749 = vmax.f32 %v741, 0.0
  %v750 = vmax.f32 %v742, 0.0
  %v751 = vmax.f32 %v743, 0.0
  %v752 = vmax.f32 %v744, 0.0
  %v753 = vmax.f32 %v745, 0.0
  %v754 = vmax.f32 %v746, 0.0
  %v755 = vld [vmem:[%s3] sm:$0xff]
  %v756 = vld [vmem:[%s3 + $0x8] sm:$0xff]
  %v757 = vld [vmem:[%s3 + $0x10] sm:$0xff]
  %v758 = vld [vmem:[%s3 + $0x18] sm:$0xff]
  %v759 = vunpack.c.l.bf16 %v755
  %v760 = vunpack.c.h.bf16 %v755
  %v761 = vunpack.c.l.bf16 %v756
  %v762 = vunpack.c.h.bf16 %v756
  %v763 = vunpack.c.l.bf16 %v757
  %v764 = vunpack.c.h.bf16 %v757
  %v765 = vunpack.c.l.bf16 %v758
  %v766 = vunpack.c.h.bf16 %v758
  %v767 = vmul.f32 %v747, %v759
  %v768 = vmul.f32 %v748, %v760
  %v769 = vmul.f32 %v749, %v761
  %v770 = vmul.f32 %v750, %v762
  %v771 = vmul.f32 %v751, %v763
  %v772 = vmul.f32 %v752, %v764
  %v773 = vmul.f32 %v753, %v765
  %v774 = vmul.f32 %v754, %v766
  %775 = vst [vmem:[%s4] sm:$0xff] %v767
  %776 = vst [vmem:[%s4 + $0x8] sm:$0xff] %v768
  %777 = vst [vmem:[%s4 + $0x10] sm:$0xff] %v769
  %778 = vst [vmem:[%s4 + $0x18] sm:$0xff] %v770
  %779 = vst [vmem:[%s4 + $0x20] sm:$0xff] %v771
  %780 = vst [vmem:[%s4 + $0x28] sm:$0xff] %v772
  %781 = vst [vmem:[%s4 + $0x30] sm:$0xff] %v773
  %782 = vst [vmem:[%s4 + $0x38] sm:$0xff] %v774
  // Predicated region
  $region18: #{my_cnn_forward.5} parent=0 // pred_check
    _
  $region19: #{my_cnn_forward.5} parent=0 // pred_check_branch
    %784 = sbr.rel (0) target = $region21
  $region20: #{my_cnn_forward.5} parent=0 // pred_region
    _
  $region21: #{my_cnn_forward.5} parent=0 // pred_fallthru
    _
  // Predicated region
  $region22: #{my_cnn_forward.5} parent=0 // pred_check
    _
  $region23: #{my_cnn_forward.5} parent=0 // pred_check_branch
    %786 = sbr.rel (0) target = $region25
  $region24: #{my_cnn_forward.5} parent=0 // pred_region
    _
  $region25: #{my_cnn_forward.5} parent=0 // pred_fallthru
    _

</llo_original>
